<compile_context>
chip_gen: v6e
topology: v6e:2x2x1
jax: 0.10.0
libtpu: 0.0.40
codegen_flags: <defaults>
</compile_context>

<pallas_src>
import functools

import numpy as np
import jax
import jax.numpy as jnp
from jax.experimental import pallas as pl
from jax.experimental.pallas import tpu as pltpu


def _mha_kernel(q_ref, k_ref, v_ref,
                wq_ref, bq_ref, wk_ref, bk_ref, wv_ref, bv_ref,
                wfc_ref, bfc_ref, gamma_ref, beta_ref,
                out_ref, attn_ref,
                acc_ref, *, eps):
    h = pl.program_id(1)                        # head index (reduction axis)
    bt, lq, d_model = q_ref.shape
    _, lk, _ = k_ref.shape
    cdt = wq_ref.dtype                          # MXU operand dtype (bf16)

    @pl.when(h == 0)
    def _():
        acc_ref[...] = jnp.zeros_like(acc_ref)

    # Flatten the batch tile into rows for the projection matmuls.
    q2 = q_ref[...].reshape(bt * lq, d_model)   # f32, also the residual
    k2 = k_ref[...].reshape(bt * lk, d_model)
    v2 = v_ref[...].reshape(bt * lk, d_model)

    # Per-head projections (weights already transposed to (D, d_head); the
    # 1/sqrt(dk) temperature is already folded into wq/bq by the wrapper).
    qh = (jnp.dot(q2.astype(cdt), wq_ref[0], preferred_element_type=jnp.float32)
          + bq_ref[0]).reshape(bt, lq, -1)
    kh = (jnp.dot(k2.astype(cdt), wk_ref[0], preferred_element_type=jnp.float32)
          + bk_ref[0]).reshape(bt, lk, -1)
    vh = (jnp.dot(v2.astype(cdt), wv_ref[0], preferred_element_type=jnp.float32)
          + bv_ref[0]).reshape(bt, lk, -1)

    # Scaled dot-product attention, batched over the batch tile (one
    # dot_general contracting the last dims -- no explicit transpose of K).
    s = jnp.einsum("bqd,bkd->bqk", qh.astype(cdt), kh.astype(cdt),
                   preferred_element_type=jnp.float32)
    s = s - jnp.max(s, axis=-1, keepdims=True)              # stable softmax
    e = jnp.exp(s)
    p = e * pl.reciprocal(jnp.sum(e, axis=-1, keepdims=True), approx=True)

    # One full-block store of this head's attention probabilities.
    attn_ref[...] = p.reshape(bt, 1, lq, lk).astype(attn_ref.dtype)

    ctx = jnp.einsum("bqk,bkd->bqd", p.astype(cdt), vh.astype(cdt),
                     preferred_element_type=jnp.float32)     # (bt, lq, dv)

    # This head's slice of the output projection, accumulated across the head
    # grid axis:  fc(concat_h ctx_h) == sum_h ctx_h @ Wfc_h.
    acc_ref[...] += jnp.dot(ctx.reshape(bt * lq, -1).astype(cdt), wfc_ref[0],
                            preferred_element_type=jnp.float32)

    @pl.when(h == pl.num_programs(1) - 1)
    def _():
        x = acc_ref[...] + bfc_ref[...] + q2                 # residual = query
        mean = jnp.mean(x, axis=-1, keepdims=True)
        var = jnp.mean(jnp.square(x - mean), axis=-1, keepdims=True)
        y = (x - mean) * jax.lax.rsqrt(var + eps)
        y = y * gamma_ref[...] + beta_ref[...]
        out_ref[...] = y.reshape(bt, lq, d_model).astype(out_ref.dtype)


def multi_head_attention(query, key, value, params, *, n_head, key_dim, value_dim,
                         block_b=None, compute_dtype=jnp.bfloat16, eps=1e-5):
    B, Lq, D = query.shape
    _, Lk, _ = key.shape
    _, Lv, _ = value.shape
    assert Lk == Lv, "key_len must equal value_len"

    H, dk, dv = n_head, key_dim, value_dim
    wq, bq = params["w_qs"]
    wk, bk = params["w_ks"]
    wv, bv = params["w_vs"]
    wfc, bfc = params["fc"]
    gamma, beta = params["ln"]

    # ---- one-time host-side weight re-layout (constant-folded / done once) --
    # PyTorch Linear weights are (out_features, in_features); re-layout to
    # head-major (H, D_in, d_head) so the kernel does plain row-major matmuls,
    # and fold the 1/sqrt(dk) temperature into the Q projection.
    inv_temp = np.float32(1.0 / np.power(dk, 0.5))

    def head_major(w, d_head):                  # (H*d_head, D) -> (H, D, d_head)
        return jnp.transpose(w.reshape(H, d_head, D), (0, 2, 1))

    wq_h = (head_major(wq, dk) * inv_temp).astype(compute_dtype)
    wk_h = head_major(wk, dk).astype(compute_dtype)
    wv_h = head_major(wv, dv).astype(compute_dtype)
    bq_h = (bq.reshape(H, 1, dk) * inv_temp).astype(jnp.float32)
    bk_h = bk.reshape(H, 1, dk).astype(jnp.float32)
    bv_h = bv.reshape(H, 1, dv).astype(jnp.float32)
    # fc weight (D, H*dv): per-head slices (H, dv, D) so partial products sum.
    wfc_h = wfc.T.reshape(H, dv, D).astype(compute_dtype)
    bfc2 = bfc.reshape(1, D).astype(jnp.float32)
    gamma2 = gamma.reshape(1, D).astype(jnp.float32)
    beta2 = beta.reshape(1, D).astype(jnp.float32)

    # ---- batch tiling: several batch elements per grid step ----
    if block_b is None:
        # per-batch-element VMEM footprint (f32): q/k/v tiles, score block,
        # attn block, accumulator.  Keep the tile comfortably under ~8 MiB.
        per_b = 4 * (Lq * D + 2 * Lk * D + 2 * Lq * Lk + Lq * D)
        cap = max(1, min(8, (8 << 20) // max(per_b, 1)))
        block_b = 1
        for cand in range(min(B, cap), 0, -1):
            if B % cand == 0:
                block_b = cand
                break
    assert B % block_b == 0, "block_b must divide the batch size"
    grid = (B // block_b, H)                    # (parallel batch tiles, head reduction)

    kernel = functools.partial(_mha_kernel, eps=eps)

    out, attn = pl.pallas_call(
        kernel,
        out_shape=(
            jax.ShapeDtypeStruct((B, Lq, D), jnp.float32),
            jax.ShapeDtypeStruct((B, H, Lq, Lk), jnp.float32),
        ),
        grid_spec=pltpu.PrefetchScalarGridSpec(
            num_scalar_prefetch=0,
            grid=grid,
            in_specs=[
                pl.BlockSpec((block_b, Lq, D), lambda b, h: (b, 0, 0)),   # query
                pl.BlockSpec((block_b, Lk, D), lambda b, h: (b, 0, 0)),   # key
                pl.BlockSpec((block_b, Lv, D), lambda b, h: (b, 0, 0)),   # value
                pl.BlockSpec((1, D, dk), lambda b, h: (h, 0, 0)),         # wq (head slice)
                pl.BlockSpec((1, 1, dk), lambda b, h: (h, 0, 0)),         # bq
                pl.BlockSpec((1, D, dk), lambda b, h: (h, 0, 0)),         # wk
                pl.BlockSpec((1, 1, dk), lambda b, h: (h, 0, 0)),         # bk
                pl.BlockSpec((1, D, dv), lambda b, h: (h, 0, 0)),         # wv
                pl.BlockSpec((1, 1, dv), lambda b, h: (h, 0, 0)),         # bv
                pl.BlockSpec((1, dv, D), lambda b, h: (h, 0, 0)),         # wfc (head slice)
                pl.BlockSpec((1, D), lambda b, h: (0, 0)),                # bfc
                pl.BlockSpec((1, D), lambda b, h: (0, 0)),                # gamma
                pl.BlockSpec((1, D), lambda b, h: (0, 0)),                # beta
            ],
            out_specs=(
                pl.BlockSpec((block_b, Lq, D), lambda b, h: (b, 0, 0)),        # output (resident over h)
                pl.BlockSpec((block_b, 1, Lq, Lk), lambda b, h: (b, h, 0, 0)),  # attention probs
            ),
            scratch_shapes=[pltpu.VMEM((block_b * Lq, D), jnp.float32)],  # fc accumulator
        ),
        compiler_params=pltpu.CompilerParams(
            dimension_semantics=("parallel", "arbitrary"),
            vmem_limit_bytes=32 * 1024 * 1024,
        ),
    )(query, key, value, wq_h, bq_h, wk_h, bk_h, wv_h, bv_h, wfc_h,
      bfc2, gamma2, beta2)
    return out, attn


def reference_mha(query, key, value, params, *, n_head, key_dim, value_dim):
    """Plain-JAX reference mirroring the PyTorch forward (eval mode)."""
    hp = jax.lax.Precision.HIGHEST
    wq, bq = params["w_qs"]
    wk, bk = params["w_ks"]
    wv, bv = params["w_vs"]
    wfc, bfc = params["fc"]
    gamma, beta = params["ln"]
    B, Lq, D = query.shape
    Lk = key.shape[1]

    qp = jnp.einsum("bld,kd->blk", query, wq, precision=hp) + bq
    kp = jnp.einsum("bld,kd->blk", key, wk, precision=hp) + bk
    vp = jnp.einsum("bld,kd->blk", value, wv, precision=hp) + bv
    qp = qp.reshape(B, Lq, n_head, key_dim).transpose(0, 2, 1, 3)
    kp = kp.reshape(B, Lk, n_head, key_dim).transpose(0, 2, 1, 3)
    vp = vp.reshape(B, Lk, n_head, value_dim).transpose(0, 2, 1, 3)
    scores = jnp.einsum("bhqd,bhkd->bhqk", qp, kp, precision=hp) / np.power(key_dim, 0.5)
    attn = jax.nn.softmax(scores, axis=-1)
    o = jnp.einsum("bhqk,bhkd->bhqd", attn, vp, precision=hp)
    o = o.transpose(0, 2, 1, 3).reshape(B, Lq, n_head * value_dim)
    o = jnp.einsum("blk,dk->bld", o, wfc, precision=hp) + bfc
    x = o + query
    mean = jnp.mean(x, axis=-1, keepdims=True)
    var = jnp.mean((x - mean) ** 2, axis=-1, keepdims=True)
    out = (x - mean) * jax.lax.rsqrt(var + 1e-5) * gamma + beta
    return out, attn


def init_params(rng, model_dim, n_head, key_dim, value_dim):
    k1, k2, k3, k4, k5, k6, k7, k8 = jax.random.split(rng, 8)
    std_qk = np.sqrt(2.0 / (model_dim + key_dim))
    std_v = np.sqrt(2.0 / (model_dim + value_dim))
    std_fc = np.sqrt(2.0 / (n_head * value_dim + model_dim))  # xavier normal
    params = {
        "w_qs": (jax.random.normal(k1, (n_head * key_dim, model_dim), jnp.float32) * std_qk,
                 jax.random.normal(k5, (n_head * key_dim,), jnp.float32) * 0.01),
        "w_ks": (jax.random.normal(k2, (n_head * key_dim, model_dim), jnp.float32) * std_qk,
                 jax.random.normal(k6, (n_head * key_dim,), jnp.float32) * 0.01),
        "w_vs": (jax.random.normal(k3, (n_head * value_dim, model_dim), jnp.float32) * std_v,
                 jax.random.normal(k7, (n_head * value_dim,), jnp.float32) * 0.01),
        "fc": (jax.random.normal(k4, (model_dim, n_head * value_dim), jnp.float32) * std_fc,
               jax.random.normal(k8, (model_dim,), jnp.float32) * 0.01),
        "ln": (jnp.ones((model_dim,), jnp.float32), jnp.zeros((model_dim,), jnp.float32)),
    }
    return params


if __name__ == "__main__":
    # small shapes consistent with the module's forward
    B, L, model_dim = 2, 8, 32
    n_head, key_dim, value_dim = 4, 8, 8

    rng = jax.random.PRNGKey(0)
    kq, kk, kv, kp = jax.random.split(rng, 4)
    query = jax.random.normal(kq, (B, L, model_dim), jnp.float32)
    key = jax.random.normal(kk, (B, L, model_dim), jnp.float32)
    value = jax.random.normal(kv, (B, L, model_dim), jnp.float32)
    params = init_params(kp, model_dim, n_head, key_dim, value_dim)

    out, attn = multi_head_attention(
        query, key, value, params,
        n_head=n_head, key_dim=key_dim, value_dim=value_dim)
    out = jax.block_until_ready(out)
    attn = jax.block_until_ready(attn)

    ref_out, ref_attn = reference_mha(
        query, key, value, params,
        n_head=n_head, key_dim=key_dim, value_dim=value_dim)

    assert out.shape == (B, L, model_dim)
    assert attn.shape == (B, n_head, L, L)
    # bf16 MXU operands (f32 accumulation) + approx softmax reciprocal -> 3e-2 tol.
    np.testing.assert_allclose(np.asarray(out), np.asarray(ref_out), rtol=3e-2, atol=3e-2)
    np.testing.assert_allclose(np.asarray(attn), np.asarray(ref_attn), rtol=3e-2, atol=3e-2)

    print("KERNEL_OK")
</pallas_src>

<mosaic_0001>
module attributes {stable_mosaic.version = 11 : i64} {
  func.func @_mha_kernel(%arg0: i32, %arg1: i32, %arg2: memref<2x8x32xf32, #tpu.memory_space<vmem>>, %arg3: memref<2x8x32xf32, #tpu.memory_space<vmem>>, %arg4: memref<2x8x32xf32, #tpu.memory_space<vmem>>, %arg5: memref<1x32x8xbf16, #tpu.memory_space<vmem>>, %arg6: memref<1x1x8xf32, #tpu.memory_space<vmem>>, %arg7: memref<1x32x8xbf16, #tpu.memory_space<vmem>>, %arg8: memref<1x1x8xf32, #tpu.memory_space<vmem>>, %arg9: memref<1x32x8xbf16, #tpu.memory_space<vmem>>, %arg10: memref<1x1x8xf32, #tpu.memory_space<vmem>>, %arg11: memref<1x8x32xbf16, #tpu.memory_space<vmem>>, %arg12: memref<1x32xf32, #tpu.memory_space<vmem>>, %arg13: memref<1x32xf32, #tpu.memory_space<vmem>>, %arg14: memref<1x32xf32, #tpu.memory_space<vmem>>, %arg15: memref<2x8x32xf32, #tpu.memory_space<vmem>>, %arg16: memref<2x1x8x8xf32, #tpu.memory_space<vmem>>, %arg17: memref<16x32xf32, #tpu.memory_space<vmem>>) attributes {dimension_semantics = [#tpu.dimension_semantics<parallel>, #tpu.dimension_semantics<arbitrary>], iteration_bounds = array<i64: 1, 4>, scalar_prefetch = 0 : i64, scratch_operands = 1 : i64, tpu.core_type = #tpu.core_type<tc>, window_params = [{transform_indices = @transform_0, window_bounds = array<i64: 2, 8, 32>}, {transform_indices = @transform_1, window_bounds = array<i64: 2, 8, 32>}, {transform_indices = @transform_2, window_bounds = array<i64: 2, 8, 32>}, {transform_indices = @transform_3, window_bounds = array<i64: 1, 32, 8>}, {transform_indices = @transform_4, window_bounds = array<i64: 1, 1, 8>}, {transform_indices = @transform_5, window_bounds = array<i64: 1, 32, 8>}, {transform_indices = @transform_6, window_bounds = array<i64: 1, 1, 8>}, {transform_indices = @transform_7, window_bounds = array<i64: 1, 32, 8>}, {transform_indices = @transform_8, window_bounds = array<i64: 1, 1, 8>}, {transform_indices = @transform_9, window_bounds = array<i64: 1, 8, 32>}, {pipeline_mode = #tpu.pipeline_mode<synchronous>, transform_indices = @transform_10, window_bounds = array<i64: 1, 32>}, {pipeline_mode = #tpu.pipeline_mode<synchronous>, transform_indices = @transform_11, window_bounds = array<i64: 1, 32>}, {pipeline_mode = #tpu.pipeline_mode<synchronous>, transform_indices = @transform_12, window_bounds = array<i64: 1, 32>}, {transform_indices = @transform_13, window_bounds = array<i64: 2, 8, 32>}, {transform_indices = @transform_14, window_bounds = array<i64: 2, 1, 8, 8>}]} {
    %c0_i32 = arith.constant 0 : i32
    %0 = arith.cmpi eq, %arg1, %c0_i32 : i32
    %1 = arith.extui %0 : i1 to i32
    %c0_i32_0 = arith.constant 0 : i32
    %2 = arith.cmpi ne, %1, %c0_i32_0 : i32
    scf.if %2 {
      %cst_46 = arith.constant 0.000000e+00 : f32
      %65 = vector.broadcast %cst_46 : f32 to vector<16x32xf32>
      %c0_47 = arith.constant 0 : index
      %c0_48 = arith.constant 0 : index
      %66 = vector.load %arg17[%c0_47, %c0_48] : memref<16x32xf32, #tpu.memory_space<vmem>>, vector<16x32xf32>
      tpu.vector_store %arg17[%c0_47, %c0_48], %65 {strides = array<i32>} : memref<16x32xf32, #tpu.memory_space<vmem>>, vector<16x32xf32>,
    } else {
    }
    %c0 = arith.constant 0 : index
    %c0_1 = arith.constant 0 : index
    %c0_2 = arith.constant 0 : index
    %3 = vector.load %arg2[%c0, %c0_1, %c0_2] : memref<2x8x32xf32, #tpu.memory_space<vmem>>, vector<2x8x32xf32>
    %4 = vector.shape_cast %3 : vector<2x8x32xf32> to vector<16x32xf32>
    %c0_3 = arith.constant 0 : index
    %c0_4 = arith.constant 0 : index
    %c0_5 = arith.constant 0 : index
    %5 = vector.load %arg3[%c0_3, %c0_4, %c0_5] : memref<2x8x32xf32, #tpu.memory_space<vmem>>, vector<2x8x32xf32>
    %6 = vector.shape_cast %5 : vector<2x8x32xf32> to vector<16x32xf32>
    %c0_6 = arith.constant 0 : index
    %c0_7 = arith.constant 0 : index
    %c0_8 = arith.constant 0 : index
    %7 = vector.load %arg4[%c0_6, %c0_7, %c0_8] : memref<2x8x32xf32, #tpu.memory_space<vmem>>, vector<2x8x32xf32>
    %8 = vector.shape_cast %7 : vector<2x8x32xf32> to vector<16x32xf32>
    %9 = arith.truncf %4 : vector<16x32xf32> to vector<16x32xbf16>
    %c0_9 = arith.constant 0 : index
    %c0_10 = arith.constant 0 : index
    %c0_11 = arith.constant 0 : index
    %10 = vector.load %arg5[%c0_9, %c0_10, %c0_11] : memref<1x32x8xbf16, #tpu.memory_space<vmem>>, vector<1x32x8xbf16>
    %11 = vector.shape_cast %10 : vector<1x32x8xbf16> to vector<32x8xbf16>
    %cst = arith.constant dense<0.000000e+00> : vector<16x8xf32>
    %12 = tpu.matmul %9, %11, %cst {dimension_numbers = #tpu.dot_dimension_numbers<[1], [0], [0], [1], [0, 0, 1, 1], [], []>} : vector<16x32xbf16>, vector<32x8xbf16>, vector<16x8xf32> -> vector<16x8xf32>
    %c0_12 = arith.constant 0 : index
    %c0_13 = arith.constant 0 : index
    %c0_14 = arith.constant 0 : index
    %13 = vector.load %arg6[%c0_12, %c0_13, %c0_14] : memref<1x1x8xf32, #tpu.memory_space<vmem>>, vector<1x1x8xf32>
    %14 = vector.shape_cast %13 : vector<1x1x8xf32> to vector<1x8xf32>
    %15 = vector.broadcast %14 : vector<1x8xf32> to vector<16x8xf32>
    %16 = arith.addf %12, %15 : vector<16x8xf32>
    %17 = vector.shape_cast %16 : vector<16x8xf32> to vector<2x8x8xf32>
    %18 = arith.truncf %6 : vector<16x32xf32> to vector<16x32xbf16>
    %c0_15 = arith.constant 0 : index
    %c0_16 = arith.constant 0 : index
    %c0_17 = arith.constant 0 : index
    %19 = vector.load %arg7[%c0_15, %c0_16, %c0_17] : memref<1x32x8xbf16, #tpu.memory_space<vmem>>, vector<1x32x8xbf16>
    %20 = vector.shape_cast %19 : vector<1x32x8xbf16> to vector<32x8xbf16>
    %cst_18 = arith.constant dense<0.000000e+00> : vector<16x8xf32>
    %21 = tpu.matmul %18, %20, %cst_18 {dimension_numbers = #tpu.dot_dimension_numbers<[1], [0], [0], [1], [0, 0, 1, 1], [], []>} : vector<16x32xbf16>, vector<32x8xbf16>, vector<16x8xf32> -> vector<16x8xf32>
    %c0_19 = arith.constant 0 : index
    %c0_20 = arith.constant 0 : index
    %c0_21 = arith.constant 0 : index
    %22 = vector.load %arg8[%c0_19, %c0_20, %c0_21] : memref<1x1x8xf32, #tpu.memory_space<vmem>>, vector<1x1x8xf32>
    %23 = vector.shape_cast %22 : vector<1x1x8xf32> to vector<1x8xf32>
    %24 = vector.broadcast %23 : vector<1x8xf32> to vector<16x8xf32>
    %25 = arith.addf %21, %24 : vector<16x8xf32>
    %26 = vector.shape_cast %25 : vector<16x8xf32> to vector<2x8x8xf32>
    %27 = arith.truncf %8 : vector<16x32xf32> to vector<16x32xbf16>
    %c0_22 = arith.constant 0 : index
    %c0_23 = arith.constant 0 : index
    %c0_24 = arith.constant 0 : index
    %28 = vector.load %arg9[%c0_22, %c0_23, %c0_24] : memref<1x32x8xbf16, #tpu.memory_space<vmem>>, vector<1x32x8xbf16>
    %29 = vector.shape_cast %28 : vector<1x32x8xbf16> to vector<32x8xbf16>
    %cst_25 = arith.constant dense<0.000000e+00> : vector<16x8xf32>
    %30 = tpu.matmul %27, %29, %cst_25 {dimension_numbers = #tpu.dot_dimension_numbers<[1], [0], [0], [1], [0, 0, 1, 1], [], []>} : vector<16x32xbf16>, vector<32x8xbf16>, vector<16x8xf32> -> vector<16x8xf32>
    %c0_26 = arith.constant 0 : index
    %c0_27 = arith.constant 0 : index
    %c0_28 = arith.constant 0 : index
    %31 = vector.load %arg10[%c0_26, %c0_27, %c0_28] : memref<1x1x8xf32, #tpu.memory_space<vmem>>, vector<1x1x8xf32>
    %32 = vector.shape_cast %31 : vector<1x1x8xf32> to vector<1x8xf32>
    %33 = vector.broadcast %32 : vector<1x8xf32> to vector<16x8xf32>
    %34 = arith.addf %30, %33 : vector<16x8xf32>
    %35 = vector.shape_cast %34 : vector<16x8xf32> to vector<2x8x8xf32>
    %36 = arith.truncf %17 : vector<2x8x8xf32> to vector<2x8x8xbf16>
    %37 = arith.truncf %26 : vector<2x8x8xf32> to vector<2x8x8xbf16>
    "tpu.trace_start"() <{level = 10 : i32, message = "bqd,bkd->bqk"}> : () -> ()
    %cst_29 = arith.constant dense<0.000000e+00> : vector<2x8x8xf32>
    %38 = tpu.matmul %36, %37, %cst_29 {dimension_numbers = #tpu.dot_dimension_numbers<[2], [2], [1], [1], [0, 0, 0, 1, 1, 1], [0], [0]>} : vector<2x8x8xbf16>, vector<2x8x8xbf16>, vector<2x8x8xf32> -> vector<2x8x8xf32>
    "tpu.trace_stop"() : () -> ()
    %cst_30 = arith.constant dense<0xFF800000> : vector<2x8xf32>
    %39 = vector.multi_reduction <maximumf>, %38, %cst_30 [2] : vector<2x8x8xf32> to vector<2x8xf32>
    %40 = vector.shape_cast %39 : vector<2x8xf32> to vector<2x8x1xf32>
    %41 = vector.broadcast %40 : vector<2x8x1xf32> to vector<2x8x8xf32>
    %42 = arith.subf %38, %41 : vector<2x8x8xf32>
    %43 = math.exp %42 : vector<2x8x8xf32>
    %cst_31 = arith.constant dense<0.000000e+00> : vector<2x8xf32>
    %44 = vector.multi_reduction <add>, %43, %cst_31 [2] : vector<2x8x8xf32> to vector<2x8xf32>
    %45 = vector.shape_cast %44 : vector<2x8xf32> to vector<2x8x1xf32>
    %46 = tpu.reciprocal %45 {approx = true} : vector<2x8x1xf32> -> vector<2x8x1xf32>
    %47 = vector.broadcast %46 : vector<2x8x1xf32> to vector<2x8x8xf32>
    %48 = arith.mulf %43, %47 : vector<2x8x8xf32>
    %49 = vector.shape_cast %48 : vector<2x8x8xf32> to vector<2x1x8x8xf32>
    %c0_32 = arith.constant 0 : index
    %c0_33 = arith.constant 0 : index
    %c0_34 = arith.constant 0 : index
    %c0_35 = arith.constant 0 : index
    %50 = vector.load %arg16[%c0_32, %c0_33, %c0_34, %c0_35] : memref<2x1x8x8xf32, #tpu.memory_space<vmem>>, vector<2x1x8x8xf32>
    tpu.vector_store %arg16[%c0_32, %c0_33, %c0_34, %c0_35], %49 {strides = array<i32>} : memref<2x1x8x8xf32, #tpu.memory_space<vmem>>, vector<2x1x8x8xf32>,
    %51 = arith.truncf %48 : vector<2x8x8xf32> to vector<2x8x8xbf16>
    %52 = arith.truncf %35 : vector<2x8x8xf32> to vector<2x8x8xbf16>
    "tpu.trace_start"() <{level = 10 : i32, message = "bqk,bkd->bqd"}> : () -> ()
    %cst_36 = arith.constant dense<0.000000e+00> : vector<2x8x8xf32>
    %53 = tpu.matmul %51, %52, %cst_36 {dimension_numbers = #tpu.dot_dimension_numbers<[2], [1], [1], [2], [0, 0, 0, 1, 1, 2], [0], [0]>} : vector<2x8x8xbf16>, vector<2x8x8xbf16>, vector<2x8x8xf32> -> vector<2x8x8xf32>
    "tpu.trace_stop"() : () -> ()
    %c0_37 = arith.constant 0 : index
    %c0_38 = arith.constant 0 : index
    %54 = vector.load %arg17[%c0_37, %c0_38] : memref<16x32xf32, #tpu.memory_space<vmem>>, vector<16x32xf32>
    %55 = vector.shape_cast %53 : vector<2x8x8xf32> to vector<16x8xf32>
    %56 = arith.truncf %55 : vector<16x8xf32> to vector<16x8xbf16>
    %c0_39 = arith.constant 0 : index
    %c0_40 = arith.constant 0 : index
    %c0_41 = arith.constant 0 : index
    %57 = vector.load %arg11[%c0_39, %c0_40, %c0_41] : memref<1x8x32xbf16, #tpu.memory_space<vmem>>, vector<1x8x32xbf16>
    %58 = vector.shape_cast %57 : vector<1x8x32xbf16> to vector<8x32xbf16>
    %cst_42 = arith.constant dense<0.000000e+00> : vector<16x32xf32>
    %59 = tpu.matmul %56, %58, %cst_42 {dimension_numbers = #tpu.dot_dimension_numbers<[1], [0], [0], [1], [0, 0, 1, 1], [], []>} : vector<16x8xbf16>, vector<8x32xbf16>, vector<16x32xf32> -> vector<16x32xf32>
    %60 = arith.addf %54, %59 : vector<16x32xf32>
    %c0_43 = arith.constant 0 : index
    %c0_44 = arith.constant 0 : index
    %61 = vector.load %arg17[%c0_43, %c0_44] : memref<16x32xf32, #tpu.memory_space<vmem>>, vector<16x32xf32>
    tpu.vector_store %arg17[%c0_43, %c0_44], %60 {strides = array<i32>} : memref<16x32xf32, #tpu.memory_space<vmem>>, vector<16x32xf32>,
    %c3_i32 = arith.constant 3 : i32
    %62 = arith.cmpi eq, %arg1, %c3_i32 : i32
    %63 = arith.extui %62 : i1 to i32
    %c0_i32_45 = arith.constant 0 : i32
    %64 = arith.cmpi ne, %63, %c0_i32_45 : i32
    scf.if %64 {
      %c0_46 = arith.constant 0 : index
      %c0_47 = arith.constant 0 : index
      %65 = vector.load %arg17[%c0_46, %c0_47] : memref<16x32xf32, #tpu.memory_space<vmem>>, vector<16x32xf32>
      %c0_48 = arith.constant 0 : index
      %c0_49 = arith.constant 0 : index
      %66 = vector.load %arg12[%c0_48, %c0_49] : memref<1x32xf32, #tpu.memory_space<vmem>>, vector<1x32xf32>
      %67 = vector.broadcast %66 : vector<1x32xf32> to vector<16x32xf32>
      %68 = arith.addf %65, %67 : vector<16x32xf32>
      %69 = arith.addf %68, %4 : vector<16x32xf32>
      %cst_50 = arith.constant dense<0.000000e+00> : vector<16xf32>
      %70 = vector.multi_reduction <add>, %69, %cst_50 [1] : vector<16x32xf32> to vector<16xf32>
      %71 = vector.shape_cast %70 : vector<16xf32> to vector<16x1xf32>
      %cst_51 = arith.constant 3.200000e+01 : f32
      %72 = vector.broadcast %cst_51 : f32 to vector<16x1xf32>
      %73 = arith.divf %71, %72 : vector<16x1xf32>
      %74 = vector.broadcast %73 : vector<16x1xf32> to vector<16x32xf32>
      %75 = arith.subf %69, %74 : vector<16x32xf32>
      %76 = arith.mulf %75, %75 : vector<16x32xf32>
      %cst_52 = arith.constant dense<0.000000e+00> : vector<16xf32>
      %77 = vector.multi_reduction <add>, %76, %cst_52 [1] : vector<16x32xf32> to vector<16xf32>
      %78 = vector.shape_cast %77 : vector<16xf32> to vector<16x1xf32>
      %cst_53 = arith.constant 3.200000e+01 : f32
      %79 = vector.broadcast %cst_53 : f32 to vector<16x1xf32>
      %80 = arith.divf %78, %79 : vector<16x1xf32>
      %81 = vector.broadcast %73 : vector<16x1xf32> to vector<16x32xf32>
      %82 = arith.subf %69, %81 : vector<16x32xf32>
      %cst_54 = arith.constant 9.99999974E-6 : f32
      %83 = vector.broadcast %cst_54 : f32 to vector<16x1xf32>
      %84 = arith.addf %80, %83 : vector<16x1xf32>
      %85 = math.rsqrt %84 : vector<16x1xf32>
      %86 = vector.broadcast %85 : vector<16x1xf32> to vector<16x32xf32>
      %87 = arith.mulf %82, %86 : vector<16x32xf32>
      %c0_55 = arith.constant 0 : index
      %c0_56 = arith.constant 0 : index
      %88 = vector.load %arg13[%c0_55, %c0_56] : memref<1x32xf32, #tpu.memory_space<vmem>>, vector<1x32xf32>
      %89 = vector.broadcast %88 : vector<1x32xf32> to vector<16x32xf32>
      %90 = arith.mulf %87, %89 : vector<16x32xf32>
      %c0_57 = arith.constant 0 : index
      %c0_58 = arith.constant 0 : index
      %91 = vector.load %arg14[%c0_57, %c0_58] : memref<1x32xf32, #tpu.memory_space<vmem>>, vector<1x32xf32>
      %92 = vector.broadcast %91 : vector<1x32xf32> to vector<16x32xf32>
      %93 = arith.addf %90, %92 : vector<16x32xf32>
      %94 = vector.shape_cast %93 : vector<16x32xf32> to vector<2x8x32xf32>
      %c0_59 = arith.constant 0 : index
      %c0_60 = arith.constant 0 : index
      %c0_61 = arith.constant 0 : index
      %95 = vector.load %arg15[%c0_59, %c0_60, %c0_61] : memref<2x8x32xf32, #tpu.memory_space<vmem>>, vector<2x8x32xf32>
      tpu.vector_store %arg15[%c0_59, %c0_60, %c0_61], %94 {strides = array<i32>} : memref<2x8x32xf32, #tpu.memory_space<vmem>>, vector<2x8x32xf32>,
    } else {
    }
    return
  }
  func.func @transform_0(%arg0: i32, %arg1: i32) -> (i32, i32, i32) {
    %c0_i32 = arith.constant 0 : i32
    %c0_i32_0 = arith.constant 0 : i32
    %c0_i32_1 = arith.constant 0 : i32
    return %arg0, %c0_i32, %c0_i32_0 : i32, i32, i32
  }
  func.func @transform_1(%arg0: i32, %arg1: i32) -> (i32, i32, i32) {
    %c0_i32 = arith.constant 0 : i32
    %c0_i32_0 = arith.constant 0 : i32
    %c0_i32_1 = arith.constant 0 : i32
    return %arg0, %c0_i32, %c0_i32_0 : i32, i32, i32
  }
  func.func @transform_2(%arg0: i32, %arg1: i32) -> (i32, i32, i32) {
    %c0_i32 = arith.constant 0 : i32
    %c0_i32_0 = arith.constant 0 : i32
    %c0_i32_1 = arith.constant 0 : i32
    return %arg0, %c0_i32, %c0_i32_0 : i32, i32, i32
  }
  func.func @transform_3(%arg0: i32, %arg1: i32) -> (i32, i32, i32) {
    %c0_i32 = arith.constant 0 : i32
    %c0_i32_0 = arith.constant 0 : i32
    %c0_i32_1 = arith.constant 0 : i32
    return %arg1, %c0_i32, %c0_i32_0 : i32, i32, i32
  }
  func.func @transform_4(%arg0: i32, %arg1: i32) -> (i32, i32, i32) {
    %c0_i32 = arith.constant 0 : i32
    %c0_i32_0 = arith.constant 0 : i32
    %c0_i32_1 = arith.constant 0 : i32
    return %arg1, %c0_i32, %c0_i32_0 : i32, i32, i32
  }
  func.func @transform_5(%arg0: i32, %arg1: i32) -> (i32, i32, i32) {
    %c0_i32 = arith.constant 0 : i32
    %c0_i32_0 = arith.constant 0 : i32
    %c0_i32_1 = arith.constant 0 : i32
    return %arg1, %c0_i32, %c0_i32_0 : i32, i32, i32
  }
  func.func @transform_6(%arg0: i32, %arg1: i32) -> (i32, i32, i32) {
    %c0_i32 = arith.constant 0 : i32
    %c0_i32_0 = arith.constant 0 : i32
    %c0_i32_1 = arith.constant 0 : i32
    return %arg1, %c0_i32, %c0_i32_0 : i32, i32, i32
  }
  func.func @transform_7(%arg0: i32, %arg1: i32) -> (i32, i32, i32) {
    %c0_i32 = arith.constant 0 : i32
    %c0_i32_0 = arith.constant 0 : i32
    %c0_i32_1 = arith.constant 0 : i32
    return %arg1, %c0_i32, %c0_i32_0 : i32, i32, i32
  }
  func.func @transform_8(%arg0: i32, %arg1: i32) -> (i32, i32, i32) {
    %c0_i32 = arith.constant 0 : i32
    %c0_i32_0 = arith.constant 0 : i32
    %c0_i32_1 = arith.constant 0 : i32
    return %arg1, %c0_i32, %c0_i32_0 : i32, i32, i32
  }
  func.func @transform_9(%arg0: i32, %arg1: i32) -> (i32, i32, i32) {
    %c0_i32 = arith.constant 0 : i32
    %c0_i32_0 = arith.constant 0 : i32
    %c0_i32_1 = arith.constant 0 : i32
    return %arg1, %c0_i32, %c0_i32_0 : i32, i32, i32
  }
  func.func @transform_10(%arg0: i32, %arg1: i32) -> (i32, i32) {
    %c0_i32 = arith.constant 0 : i32
    %c0_i32_0 = arith.constant 0 : i32
    %c0_i32_1 = arith.constant 0 : i32
    return %c0_i32, %c0_i32_0 : i32, i32
  }
  func.func @transform_11(%arg0: i32, %arg1: i32) -> (i32, i32) {
    %c0_i32 = arith.constant 0 : i32
    %c0_i32_0 = arith.constant 0 : i32
    %c0_i32_1 = arith.constant 0 : i32
    return %c0_i32, %c0_i32_0 : i32, i32
  }
  func.func @transform_12(%arg0: i32, %arg1: i32) -> (i32, i32) {
    %c0_i32 = arith.constant 0 : i32
    %c0_i32_0 = arith.constant 0 : i32
    %c0_i32_1 = arith.constant 0 : i32
    return %c0_i32, %c0_i32_0 : i32, i32
  }
  func.func @transform_13(%arg0: i32, %arg1: i32) -> (i32, i32, i32) {
    %c0_i32 = arith.constant 0 : i32
    %c0_i32_0 = arith.constant 0 : i32
    %c0_i32_1 = arith.constant 0 : i32
    return %arg0, %c0_i32, %c0_i32_0 : i32, i32, i32
  }
  func.func @transform_14(%arg0: i32, %arg1: i32) -> (i32, i32, i32, i32) {
    %c0_i32 = arith.constant 0 : i32
    %c0_i32_0 = arith.constant 0 : i32
    %c0_i32_1 = arith.constant 0 : i32
    return %arg0, %arg1, %c0_i32, %c0_i32_0 : i32, i32, i32, i32
  }
}

</mosaic_0001>

<llo_original>
// kernel: tpu_custom_call.1
$region0: #{tpu_custom_call.1}
  #allocation0 [shape = 'u32[]', space=smem, size = 0x4, offset = 0x4, fixed_abs, tag = 'smem constant byte address 0x4 - core index']
  #allocation1 [shape = 'u32[144,128]{1,0:T(1,128)}', space=vmem, size = 0x12000, scoped, tag = 'internal scratch']
  #allocation2 [shape = 'f32[16,32]{1,0:T(8,128)}', space=vmem, size = 0x2000, scoped, tag = 'scratch operand']
  %s0 = inlined_call_operand.vmem [shape: f32[2,8,32], index: 0, kind: input, shape index: {}]
  %s1 = inlined_call_operand.vmem [shape: f32[2,8,32], index: 1, kind: input, shape index: {}]
  %s2 = inlined_call_operand.vmem [shape: f32[2,8,32], index: 2, kind: input, shape index: {}]
  %s3 = inlined_call_operand.vmem [shape: bf16[4,32,8], index: 3, kind: input, shape index: {}]
  %s4 = inlined_call_operand.vmem [shape: f32[4,1,8], index: 4, kind: input, shape index: {}]
  %s5 = inlined_call_operand.vmem [shape: bf16[4,32,8], index: 5, kind: input, shape index: {}]
  %s6 = inlined_call_operand.vmem [shape: f32[4,1,8], index: 6, kind: input, shape index: {}]
  %s7 = inlined_call_operand.vmem [shape: bf16[4,32,8], index: 7, kind: input, shape index: {}]
  %s8 = inlined_call_operand.vmem [shape: f32[4,1,8], index: 8, kind: input, shape index: {}]
  %s9 = inlined_call_operand.vmem [shape: bf16[4,8,32], index: 9, kind: input, shape index: {}]
  %s10 = inlined_call_operand.vmem [shape: f32[1,32], index: 10, kind: input, shape index: {}]
  %s11 = inlined_call_operand.vmem [shape: f32[1,32], index: 11, kind: input, shape index: {}]
  %s12 = inlined_call_operand.vmem [shape: f32[1,32], index: 12, kind: input, shape index: {}]
  %s13 = inlined_call_operand.hbm [shape: f32[2,8,32], index: 13, kind: output, shape index: {0}]
  %s14 = inlined_call_operand.hbm [shape: f32[2,4,8,8], index: 14, kind: output, shape index: {1}]
  %15 = xla_tuple %s13, %s14
  %s16 = sld [smem:[#allocation0]]
  $region101: #{tpu_custom_call.1} parent=0
    _
  %s18 = ssub.s32 1, %s16
  %s19 = scalar_select 0, %s18, %s16
  $region1: #{tpu_custom_call.1} parent=0
    #allocation3 [shape = 'u8[8192]{0}', space=vmem, size = 0x2000, scoped, tag = 'output window, operand 0, single buffered']
    #allocation4 [shape = 's32[2]{0}', space=sflag, size = 0x8, scoped, tag = 'scoped memory for tpu_custom_call.1']
    #allocation5 [shape = 'u8[16384]{0}', space=vmem, size = 0x4000, scoped, tag = 'output window, operand 1']
    #allocation6 [shape = 's32[2]{0}', space=sflag, size = 0x8, scoped, tag = 'scoped memory for tpu_custom_call.1']
    %20 = vsyncpa [#allocation4], 0
    %21 = vsyncpa [#allocation6], 0
    %s22 = scalar_lea.sflag [#allocation6], 1
    %23 = vsyncpa %s22, 0
    loop: start=0, step=1, limit=6
    $region2: #{tpu_custom_call.1} parent=1 // loop_pre_header
      _
    $region3: #{tpu_custom_call.1} parent=1 // loop_header
      %s25 = sphi 0, %s29
      %p26 = scmp.ge.s32.totalorder %s25, 6
      %s32 = sphi 0, %s44
      %s33 = sphi 0, %s40
      %s34 = sphi 0, %s32
      %s35 = sphi 0, %s33
      %s36 = sphi 0, %s34
      %s37 = sphi 0, %s35
      %s47 = sphi 0, %s49
      %s50 = sphi 0, %s47
      %s51 = sphi 0, %s50
      %s67 = sphi 0, %s51
      %s73 = sphi 0, %s75
      %s76 = sphi 0, %s73
      %s77 = sphi 0, %s76
      %s93 = sphi 0, %s77
      %s99 = sphi 0, %s101
      %s102 = sphi 0, %s99
      %s103 = sphi 0, %s102
      %s119 = sphi 0, %s103
      %s125 = sphi 0, %s127
      %s128 = sphi 0, %s125
      %s129 = sphi 0, %s128
      %s145 = sphi 0, %s129
      %s151 = sphi 0, %s153
      %s154 = sphi 0, %s151
      %s155 = sphi 0, %s154
      %s171 = sphi 0, %s155
      %s177 = sphi 0, %s179
      %s180 = sphi 0, %s177
      %s181 = sphi 0, %s180
      %s197 = sphi 0, %s181
      %s203 = sphi 0, %s205
      %s206 = sphi 0, %s203
      %s207 = sphi 0, %s206
      %s223 = sphi 0, %s207
      %s229 = sphi 0, %s231
      %s232 = sphi 0, %s229
      %s233 = sphi 0, %s232
      %s249 = sphi 0, %s233
      %s255 = sphi 0, %s257
      %s258 = sphi 0, %s255
      %s259 = sphi 0, %s258
      %s275 = sphi 0, %s259
      %s281 = sphi 0, %s283
      %s284 = sphi 0, %s281
      %s285 = sphi 0, %s284
      %s301 = sphi 0, %s285
      %s305 = sphi 0, %s305
      %s307 = sphi 0, %s305
      %s308 = sphi 0, %s307
      %s322 = sphi 0, %s308
      %s326 = sphi 0, %s326
      %s328 = sphi 0, %s326
      %s329 = sphi 0, %s328
      %s343 = sphi 0, %s329
      %s347 = sphi 0, %s347
      %s349 = sphi 0, %s347
      %s350 = sphi 0, %s349
      %s364 = sphi 0, %s350
      %s370 = sphi 0, %s372
      %s373 = sphi 0, %s370
      %s374 = sphi 0, %s373
      %s390 = sphi 0, %s374
      %s398 = sphi 0, %s400
      %s401 = sphi 0, %s398
      %s402 = sphi 0, %s401
      %s418 = sphi 0, %s402
    $region4: #{tpu_custom_call.1} parent=1 // loop_header_branch
      %28 = sbr.rel (%p26) target = $region8
    $region5: #{tpu_custom_call.1} parent=1 // loop_body
      %s30 = ssub.s32 %s25, 1
      %s31 = ssub.s32 %s25, 2
      %s38 = sadd.s32 1, %s33
      %p39 = scmp.ge.s32.totalorder %s38, 4
      %s40 = scalar_select %p39, 0, %s38
      %s41 = sadd.s32 1, %s32
      %s42 = scalar_select %p39, %s41, %s32
      %p43 = scmp.ge.s32.totalorder %s42, 1
      %s44 = scalar_select %p43, 0, %s42
      %s45 = ssub.s32 %s32, %s44
      %p46 = scmp.eq.s32.totalorder %s45, 0
      %s48 = sadd.s32 %s47, 1
      %s49 = scalar_select %p46, %s47, %s48
      %p52 = pneg %p46
      %p53 = scmp.eq.s32.totalorder %s25, 3
      %p54 = por %p52, %p53
      %p55 = scmp.ne.s32.totalorder %s47, %s50
      %p56 = scmp.eq.s32.totalorder %s25, 0
      %p57 = por %p55, %p56
      %p58 = scmp.ne.s32.totalorder %s47, %s50
      %p59 = scmp.eq.s32.totalorder %s30, 3
      %p60 = por %p58, %p59
      %p61 = scmp.ne.s32.totalorder %s50, %s51
      %p62 = scmp.eq.s32.totalorder %s30, 0
      %p63 = por %p61, %p62
      %p64 = scmp.ne.s32.totalorder %s50, %s51
      %p65 = scmp.eq.s32.totalorder %s31, 3
      %p66 = por %p64, %p65
      %p68 = scmp.ne.s32.totalorder %s51, %s67
      %p69 = scmp.eq.s32.totalorder %s31, 0
      %p70 = por %p68, %p69
      %s71 = ssub.s32 %s32, %s44
      %p72 = scmp.eq.s32.totalorder %s71, 0
      %s74 = sadd.s32 %s73, 1
      %s75 = scalar_select %p72, %s73, %s74
      %p78 = pneg %p72
      %p79 = scmp.eq.s32.totalorder %s25, 3
      %p80 = por %p78, %p79
      %p81 = scmp.ne.s32.totalorder %s73, %s76
      %p82 = scmp.eq.s32.totalorder %s25, 0
      %p83 = por %p81, %p82
      %p84 = scmp.ne.s32.totalorder %s73, %s76
      %p85 = scmp.eq.s32.totalorder %s30, 3
      %p86 = por %p84, %p85
      %p87 = scmp.ne.s32.totalorder %s76, %s77
      %p88 = scmp.eq.s32.totalorder %s30, 0
      %p89 = por %p87, %p88
      %p90 = scmp.ne.s32.totalorder %s76, %s77
      %p91 = scmp.eq.s32.totalorder %s31, 3
      %p92 = por %p90, %p91
      %p94 = scmp.ne.s32.totalorder %s77, %s93
      %p95 = scmp.eq.s32.totalorder %s31, 0
      %p96 = por %p94, %p95
      %s97 = ssub.s32 %s32, %s44
      %p98 = scmp.eq.s32.totalorder %s97, 0
      %s100 = sadd.s32 %s99, 1
      %s101 = scalar_select %p98, %s99, %s100
      %p104 = pneg %p98
      %p105 = scmp.eq.s32.totalorder %s25, 3
      %p106 = por %p104, %p105
      %p107 = scmp.ne.s32.totalorder %s99, %s102
      %p108 = scmp.eq.s32.totalorder %s25, 0
      %p109 = por %p107, %p108
      %p110 = scmp.ne.s32.totalorder %s99, %s102
      %p111 = scmp.eq.s32.totalorder %s30, 3
      %p112 = por %p110, %p111
      %p113 = scmp.ne.s32.totalorder %s102, %s103
      %p114 = scmp.eq.s32.totalorder %s30, 0
      %p115 = por %p113, %p114
      %p116 = scmp.ne.s32.totalorder %s102, %s103
      %p117 = scmp.eq.s32.totalorder %s31, 3
      %p118 = por %p116, %p117
      %p120 = scmp.ne.s32.totalorder %s103, %s119
      %p121 = scmp.eq.s32.totalorder %s31, 0
      %p122 = por %p120, %p121
      %s123 = ssub.s32 %s33, %s40
      %p124 = scmp.eq.s32.totalorder %s123, 0
      %s126 = sadd.s32 %s125, 1
      %s127 = scalar_select %p124, %s125, %s126
      %p130 = pneg %p124
      %p131 = scmp.eq.s32.totalorder %s25, 3
      %p132 = por %p130, %p131
      %p133 = scmp.ne.s32.totalorder %s125, %s128
      %p134 = scmp.eq.s32.totalorder %s25, 0
      %p135 = por %p133, %p134
      %p136 = scmp.ne.s32.totalorder %s125, %s128
      %p137 = scmp.eq.s32.totalorder %s30, 3
      %p138 = por %p136, %p137
      %p139 = scmp.ne.s32.totalorder %s128, %s129
      %p140 = scmp.eq.s32.totalorder %s30, 0
      %p141 = por %p139, %p140
      %p142 = scmp.ne.s32.totalorder %s128, %s129
      %p143 = scmp.eq.s32.totalorder %s31, 3
      %p144 = por %p142, %p143
      %p146 = scmp.ne.s32.totalorder %s129, %s145
      %p147 = scmp.eq.s32.totalorder %s31, 0
      %p148 = por %p146, %p147
      %s149 = ssub.s32 %s33, %s40
      %p150 = scmp.eq.s32.totalorder %s149, 0
      %s152 = sadd.s32 %s151, 1
      %s153 = scalar_select %p150, %s151, %s152
      %p156 = pneg %p150
      %p157 = scmp.eq.s32.totalorder %s25, 3
      %p158 = por %p156, %p157
      %p159 = scmp.ne.s32.totalorder %s151, %s154
      %p160 = scmp.eq.s32.totalorder %s25, 0
      %p161 = por %p159, %p160
      %p162 = scmp.ne.s32.totalorder %s151, %s154
      %p163 = scmp.eq.s32.totalorder %s30, 3
      %p164 = por %p162, %p163
      %p165 = scmp.ne.s32.totalorder %s154, %s155
      %p166 = scmp.eq.s32.totalorder %s30, 0
      %p167 = por %p165, %p166
      %p168 = scmp.ne.s32.totalorder %s154, %s155
      %p169 = scmp.eq.s32.totalorder %s31, 3
      %p170 = por %p168, %p169
      %p172 = scmp.ne.s32.totalorder %s155, %s171
      %p173 = scmp.eq.s32.totalorder %s31, 0
      %p174 = por %p172, %p173
      %s175 = ssub.s32 %s33, %s40
      %p176 = scmp.eq.s32.totalorder %s175, 0
      %s178 = sadd.s32 %s177, 1
      %s179 = scalar_select %p176, %s177, %s178
      %p182 = pneg %p176
      %p183 = scmp.eq.s32.totalorder %s25, 3
      %p184 = por %p182, %p183
      %p185 = scmp.ne.s32.totalorder %s177, %s180
      %p186 = scmp.eq.s32.totalorder %s25, 0
      %p187 = por %p185, %p186
      %p188 = scmp.ne.s32.totalorder %s177, %s180
      %p189 = scmp.eq.s32.totalorder %s30, 3
      %p190 = por %p188, %p189
      %p191 = scmp.ne.s32.totalorder %s180, %s181
      %p192 = scmp.eq.s32.totalorder %s30, 0
      %p193 = por %p191, %p192
      %p194 = scmp.ne.s32.totalorder %s180, %s181
      %p195 = scmp.eq.s32.totalorder %s31, 3
      %p196 = por %p194, %p195
      %p198 = scmp.ne.s32.totalorder %s181, %s197
      %p199 = scmp.eq.s32.totalorder %s31, 0
      %p200 = por %p198, %p199
      %s201 = ssub.s32 %s33, %s40
      %p202 = scmp.eq.s32.totalorder %s201, 0
      %s204 = sadd.s32 %s203, 1
      %s205 = scalar_select %p202, %s203, %s204
      %p208 = pneg %p202
      %p209 = scmp.eq.s32.totalorder %s25, 3
      %p210 = por %p208, %p209
      %p211 = scmp.ne.s32.totalorder %s203, %s206
      %p212 = scmp.eq.s32.totalorder %s25, 0
      %p213 = por %p211, %p212
      %p214 = scmp.ne.s32.totalorder %s203, %s206
      %p215 = scmp.eq.s32.totalorder %s30, 3
      %p216 = por %p214, %p215
      %p217 = scmp.ne.s32.totalorder %s206, %s207
      %p218 = scmp.eq.s32.totalorder %s30, 0
      %p219 = por %p217, %p218
      %p220 = scmp.ne.s32.totalorder %s206, %s207
      %p221 = scmp.eq.s32.totalorder %s31, 3
      %p222 = por %p220, %p221
      %p224 = scmp.ne.s32.totalorder %s207, %s223
      %p225 = scmp.eq.s32.totalorder %s31, 0
      %p226 = por %p224, %p225
      %s227 = ssub.s32 %s33, %s40
      %p228 = scmp.eq.s32.totalorder %s227, 0
      %s230 = sadd.s32 %s229, 1
      %s231 = scalar_select %p228, %s229, %s230
      %p234 = pneg %p228
      %p235 = scmp.eq.s32.totalorder %s25, 3
      %p236 = por %p234, %p235
      %p237 = scmp.ne.s32.totalorder %s229, %s232
      %p238 = scmp.eq.s32.totalorder %s25, 0
      %p239 = por %p237, %p238
      %p240 = scmp.ne.s32.totalorder %s229, %s232
      %p241 = scmp.eq.s32.totalorder %s30, 3
      %p242 = por %p240, %p241
      %p243 = scmp.ne.s32.totalorder %s232, %s233
      %p244 = scmp.eq.s32.totalorder %s30, 0
      %p245 = por %p243, %p244
      %p246 = scmp.ne.s32.totalorder %s232, %s233
      %p247 = scmp.eq.s32.totalorder %s31, 3
      %p248 = por %p246, %p247
      %p250 = scmp.ne.s32.totalorder %s233, %s249
      %p251 = scmp.eq.s32.totalorder %s31, 0
      %p252 = por %p250, %p251
      %s253 = ssub.s32 %s33, %s40
      %p254 = scmp.eq.s32.totalorder %s253, 0
      %s256 = sadd.s32 %s255, 1
      %s257 = scalar_select %p254, %s255, %s256
      %p260 = pneg %p254
      %p261 = scmp.eq.s32.totalorder %s25, 3
      %p262 = por %p260, %p261
      %p263 = scmp.ne.s32.totalorder %s255, %s258
      %p264 = scmp.eq.s32.totalorder %s25, 0
      %p265 = por %p263, %p264
      %p266 = scmp.ne.s32.totalorder %s255, %s258
      %p267 = scmp.eq.s32.totalorder %s30, 3
      %p268 = por %p266, %p267
      %p269 = scmp.ne.s32.totalorder %s258, %s259
      %p270 = scmp.eq.s32.totalorder %s30, 0
      %p271 = por %p269, %p270
      %p272 = scmp.ne.s32.totalorder %s258, %s259
      %p273 = scmp.eq.s32.totalorder %s31, 3
      %p274 = por %p272, %p273
      %p276 = scmp.ne.s32.totalorder %s259, %s275
      %p277 = scmp.eq.s32.totalorder %s31, 0
      %p278 = por %p276, %p277
      %s279 = ssub.s32 %s33, %s40
      %p280 = scmp.eq.s32.totalorder %s279, 0
      %s282 = sadd.s32 %s281, 1
      %s283 = scalar_select %p280, %s281, %s282
      %p286 = pneg %p280
      %p287 = scmp.eq.s32.totalorder %s25, 3
      %p288 = por %p286, %p287
      %p289 = scmp.ne.s32.totalorder %s281, %s284
      %p290 = scmp.eq.s32.totalorder %s25, 0
      %p291 = por %p289, %p290
      %p292 = scmp.ne.s32.totalorder %s281, %s284
      %p293 = scmp.eq.s32.totalorder %s30, 3
      %p294 = por %p292, %p293
      %p295 = scmp.ne.s32.totalorder %s284, %s285
      %p296 = scmp.eq.s32.totalorder %s30, 0
      %p297 = por %p295, %p296
      %p298 = scmp.ne.s32.totalorder %s284, %s285
      %p299 = scmp.eq.s32.totalorder %s31, 3
      %p300 = por %p298, %p299
      %p302 = scmp.ne.s32.totalorder %s285, %s301
      %p303 = scmp.eq.s32.totalorder %s31, 0
      %p304 = por %p302, %p303
      %s306 = sadd.s32 %s305, 1
      %p309 = scmp.eq.s32.totalorder %s25, 3
      %p310 = scmp.ne.s32.totalorder %s305, %s307
      %p311 = scmp.eq.s32.totalorder %s25, 0
      %p312 = por %p310, %p311
      %p313 = scmp.ne.s32.totalorder %s305, %s307
      %p314 = scmp.eq.s32.totalorder %s30, 3
      %p315 = por %p313, %p314
      %p316 = scmp.ne.s32.totalorder %s307, %s308
      %p317 = scmp.eq.s32.totalorder %s30, 0
      %p318 = por %p316, %p317
      %p319 = scmp.ne.s32.totalorder %s307, %s308
      %p320 = scmp.eq.s32.totalorder %s31, 3
      %p321 = por %p319, %p320
      %p323 = scmp.ne.s32.totalorder %s308, %s322
      %p324 = scmp.eq.s32.totalorder %s31, 0
      %p325 = por %p323, %p324
      %s327 = sadd.s32 %s326, 1
      %p330 = scmp.eq.s32.totalorder %s25, 3
      %p331 = scmp.ne.s32.totalorder %s326, %s328
      %p332 = scmp.eq.s32.totalorder %s25, 0
      %p333 = por %p331, %p332
      %p334 = scmp.ne.s32.totalorder %s326, %s328
      %p335 = scmp.eq.s32.totalorder %s30, 3
      %p336 = por %p334, %p335
      %p337 = scmp.ne.s32.totalorder %s328, %s329
      %p338 = scmp.eq.s32.totalorder %s30, 0
      %p339 = por %p337, %p338
      %p340 = scmp.ne.s32.totalorder %s328, %s329
      %p341 = scmp.eq.s32.totalorder %s31, 3
      %p342 = por %p340, %p341
      %p344 = scmp.ne.s32.totalorder %s329, %s343
      %p345 = scmp.eq.s32.totalorder %s31, 0
      %p346 = por %p344, %p345
      %s348 = sadd.s32 %s347, 1
      %p351 = scmp.eq.s32.totalorder %s25, 3
      %p352 = scmp.ne.s32.totalorder %s347, %s349
      %p353 = scmp.eq.s32.totalorder %s25, 0
      %p354 = por %p352, %p353
      %p355 = scmp.ne.s32.totalorder %s347, %s349
      %p356 = scmp.eq.s32.totalorder %s30, 3
      %p357 = por %p355, %p356
      %p358 = scmp.ne.s32.totalorder %s349, %s350
      %p359 = scmp.eq.s32.totalorder %s30, 0
      %p360 = por %p358, %p359
      %p361 = scmp.ne.s32.totalorder %s349, %s350
      %p362 = scmp.eq.s32.totalorder %s31, 3
      %p363 = por %p361, %p362
      %p365 = scmp.ne.s32.totalorder %s350, %s364
      %p366 = scmp.eq.s32.totalorder %s31, 0
      %p367 = por %p365, %p366
      %s368 = ssub.s32 %s32, %s44
      %p369 = scmp.eq.s32.totalorder %s368, 0
      %s371 = sadd.s32 %s370, 1
      %s372 = scalar_select %p369, %s370, %s371
      %p375 = pneg %p369
      %p376 = scmp.eq.s32.totalorder %s25, 3
      %p377 = por %p375, %p376
      %p378 = scmp.ne.s32.totalorder %s370, %s373
      %p379 = scmp.eq.s32.totalorder %s25, 0
      %p380 = por %p378, %p379
      %p381 = scmp.ne.s32.totalorder %s370, %s373
      %p382 = scmp.eq.s32.totalorder %s30, 3
      %p383 = por %p381, %p382
      %p384 = scmp.ne.s32.totalorder %s373, %s374
      %p385 = scmp.eq.s32.totalorder %s30, 0
      %p386 = por %p384, %p385
      %p387 = scmp.ne.s32.totalorder %s373, %s374
      %p388 = scmp.eq.s32.totalorder %s31, 3
      %p389 = por %p387, %p388
      %p391 = scmp.ne.s32.totalorder %s374, %s390
      %p392 = scmp.eq.s32.totalorder %s31, 0
      %p393 = por %p391, %p392
      %s394 = ssub.s32 %s32, %s44
      %s395 = ssub.s32 %s33, %s40
      %s396 = sor.u32 %s394, %s395
      %p397 = scmp.eq.s32.totalorder %s396, 0
      %s399 = sadd.s32 %s398, 1
      %s400 = scalar_select %p397, %s398, %s399
      %p403 = pneg %p397
      %p404 = scmp.eq.s32.totalorder %s25, 3
      %p405 = por %p403, %p404
      %p406 = scmp.ne.s32.totalorder %s398, %s401
      %p407 = scmp.eq.s32.totalorder %s25, 0
      %p408 = por %p406, %p407
      %p409 = scmp.ne.s32.totalorder %s398, %s401
      %p410 = scmp.eq.s32.totalorder %s30, 3
      %p411 = por %p409, %p410
      %p412 = scmp.ne.s32.totalorder %s401, %s402
      %p413 = scmp.eq.s32.totalorder %s30, 0
      %p414 = por %p412, %p413
      %p415 = scmp.ne.s32.totalorder %s401, %s402
      %p416 = scmp.eq.s32.totalorder %s31, 3
      %p417 = por %p415, %p416
      %p419 = scmp.ne.s32.totalorder %s402, %s418
      %p420 = scmp.eq.s32.totalorder %s31, 0
      %p421 = por %p419, %p420
      %p422 = scmp.le.s32.totalorder 1, %s25
      %p423 = scmp.lt.s32.totalorder %s25, 5
      %p424 = pnand %p422, %p423
      %p425 = pneg %p424
      // Predicated region
      $region9: #{tpu_custom_call.1} parent=5 // pred_check
        _
      $region10: #{tpu_custom_call.1} parent=5 // pred_check_branch
        %427 = sbr.rel (%p424) target = $region12
      $region11: #{tpu_custom_call.1} parent=5 // pred_region
        %s428 = ssub.s32 %s25, 1
        // Predicated region
        $region13: #{tpu_custom_call.1} parent=11 // pred_check
          %p429 = pneg %p63
        $region14: #{tpu_custom_call.1} parent=11 // pred_check_branch
          %431 = sbr.rel (%p429) target = $region16
        $region15: #{tpu_custom_call.1} parent=11 // pred_region
          %s432 = smul.u32 2, %s34
          %p433 = scmp.lt.s32.totalorder %s432, 1
          %s434 = scalar_select %p433, %s432, 1
          %s435 = smul.addr %s434, 8
          %s436 = scalar_lea.vmem %s0, %s435
          %s437 = smul.u32 2, %s34
        $region16: #{tpu_custom_call.1} parent=11 // pred_fallthru
          _
        // Predicated region
        $region17: #{tpu_custom_call.1} parent=11 // pred_check
          %p438 = pneg %p89
        $region18: #{tpu_custom_call.1} parent=11 // pred_check_branch
          %440 = sbr.rel (%p438) target = $region20
        $region19: #{tpu_custom_call.1} parent=11 // pred_region
          %s441 = smul.u32 2, %s34
          %p442 = scmp.lt.s32.totalorder %s441, 1
          %s443 = scalar_select %p442, %s441, 1
          %s444 = smul.addr %s443, 8
          %s445 = scalar_lea.vmem %s1, %s444
          %s446 = smul.u32 2, %s34
        $region20: #{tpu_custom_call.1} parent=11 // pred_fallthru
          _
        // Predicated region
        $region21: #{tpu_custom_call.1} parent=11 // pred_check
          %p447 = pneg %p115
        $region22: #{tpu_custom_call.1} parent=11 // pred_check_branch
          %449 = sbr.rel (%p447) target = $region24
        $region23: #{tpu_custom_call.1} parent=11 // pred_region
          %s450 = smul.u32 2, %s34
          %p451 = scmp.lt.s32.totalorder %s450, 1
          %s452 = scalar_select %p451, %s450, 1
          %s453 = smul.addr %s452, 8
          %s454 = scalar_lea.vmem %s2, %s453
          %s455 = smul.u32 2, %s34
        $region24: #{tpu_custom_call.1} parent=11 // pred_fallthru
          _
        // Predicated region
        $region25: #{tpu_custom_call.1} parent=11 // pred_check
          %p456 = pneg %p318
        $region26: #{tpu_custom_call.1} parent=11 // pred_check_branch
          %458 = sbr.rel (%p456) target = $region28
        $region27: #{tpu_custom_call.1} parent=11 // pred_region
          _
        $region28: #{tpu_custom_call.1} parent=11 // pred_fallthru
          _
        // Predicated region
        $region29: #{tpu_custom_call.1} parent=11 // pred_check
          %p459 = pneg %p339
        $region30: #{tpu_custom_call.1} parent=11 // pred_check_branch
          %461 = sbr.rel (%p459) target = $region32
        $region31: #{tpu_custom_call.1} parent=11 // pred_region
          _
        $region32: #{tpu_custom_call.1} parent=11 // pred_fallthru
          _
        // Predicated region
        $region33: #{tpu_custom_call.1} parent=11 // pred_check
          %p462 = pneg %p360
        $region34: #{tpu_custom_call.1} parent=11 // pred_check_branch
          %464 = sbr.rel (%p462) target = $region36
        $region35: #{tpu_custom_call.1} parent=11 // pred_region
          _
        $region36: #{tpu_custom_call.1} parent=11 // pred_fallthru
          _
      $region12: #{tpu_custom_call.1} parent=5 // pred_fallthru
        _
      %p465 = scmp.lt.s32.totalorder %s25, 4
      // Predicated region
      $region37: #{tpu_custom_call.1} parent=5 // pred_check
        %p466 = pneg %p465
      $region38: #{tpu_custom_call.1} parent=5 // pred_check_branch
        %468 = sbr.rel (%p466) target = $region40
      $region39: #{tpu_custom_call.1} parent=5 // pred_region
        // Predicated region
        $region41: #{tpu_custom_call.1} parent=39 // pred_check
          %p469 = pneg %p135
        $region42: #{tpu_custom_call.1} parent=39 // pred_check_branch
          %471 = sbr.rel (%p469) target = $region44
        $region43: #{tpu_custom_call.1} parent=39 // pred_region
          %p472 = scmp.lt.s32.totalorder %s33, 3
          %s473 = scalar_select %p472, %s33, 3
          %s474 = smul.addr %s473, 4
          %s475 = smul.addr %s474, 4
          %s476 = scalar_lea.vmem %s3, %s475
        $region44: #{tpu_custom_call.1} parent=39 // pred_fallthru
          _
        // Predicated region
        $region45: #{tpu_custom_call.1} parent=39 // pred_check
          %p477 = pneg %p161
        $region46: #{tpu_custom_call.1} parent=39 // pred_check_branch
          %479 = sbr.rel (%p477) target = $region48
        $region47: #{tpu_custom_call.1} parent=39 // pred_region
          %p480 = scmp.lt.s32.totalorder %s33, 3
          %s481 = scalar_select %p480, %s33, 3
          %s482 = scalar_lea.vmem %s4, %s481
        $region48: #{tpu_custom_call.1} parent=39 // pred_fallthru
          _
        // Predicated region
        $region49: #{tpu_custom_call.1} parent=39 // pred_check
          %p483 = pneg %p187
        $region50: #{tpu_custom_call.1} parent=39 // pred_check_branch
          %485 = sbr.rel (%p483) target = $region52
        $region51: #{tpu_custom_call.1} parent=39 // pred_region
          %p486 = scmp.lt.s32.totalorder %s33, 3
          %s487 = scalar_select %p486, %s33, 3
          %s488 = smul.addr %s487, 4
          %s489 = smul.addr %s488, 4
          %s490 = scalar_lea.vmem %s5, %s489
        $region52: #{tpu_custom_call.1} parent=39 // pred_fallthru
          _
        // Predicated region
        $region53: #{tpu_custom_call.1} parent=39 // pred_check
          %p491 = pneg %p213
        $region54: #{tpu_custom_call.1} parent=39 // pred_check_branch
          %493 = sbr.rel (%p491) target = $region56
        $region55: #{tpu_custom_call.1} parent=39 // pred_region
          %p494 = scmp.lt.s32.totalorder %s33, 3
          %s495 = scalar_select %p494, %s33, 3
          %s496 = scalar_lea.vmem %s6, %s495
        $region56: #{tpu_custom_call.1} parent=39 // pred_fallthru
          _
        // Predicated region
        $region57: #{tpu_custom_call.1} parent=39 // pred_check
          %p497 = pneg %p239
        $region58: #{tpu_custom_call.1} parent=39 // pred_check_branch
          %499 = sbr.rel (%p497) target = $region60
        $region59: #{tpu_custom_call.1} parent=39 // pred_region
          %p500 = scmp.lt.s32.totalorder %s33, 3
          %s501 = scalar_select %p500, %s33, 3
          %s502 = smul.addr %s501, 4
          %s503 = smul.addr %s502, 4
          %s504 = scalar_lea.vmem %s7, %s503
        $region60: #{tpu_custom_call.1} parent=39 // pred_fallthru
          _
        // Predicated region
        $region61: #{tpu_custom_call.1} parent=39 // pred_check
          %p505 = pneg %p265
        $region62: #{tpu_custom_call.1} parent=39 // pred_check_branch
          %507 = sbr.rel (%p505) target = $region64
        $region63: #{tpu_custom_call.1} parent=39 // pred_region
          %p508 = scmp.lt.s32.totalorder %s33, 3
          %s509 = scalar_select %p508, %s33, 3
          %s510 = scalar_lea.vmem %s8, %s509
        $region64: #{tpu_custom_call.1} parent=39 // pred_fallthru
          _
        // Predicated region
        $region65: #{tpu_custom_call.1} parent=39 // pred_check
          %p511 = pneg %p291
        $region66: #{tpu_custom_call.1} parent=39 // pred_check_branch
          %513 = sbr.rel (%p511) target = $region68
        $region67: #{tpu_custom_call.1} parent=39 // pred_region
          %p514 = scmp.lt.s32.totalorder %s33, 3
          %s515 = scalar_select %p514, %s33, 3
          %s516 = smul.addr %s515, 4
          %s517 = scalar_lea.vmem %s9, %s516
        $region68: #{tpu_custom_call.1} parent=39 // pred_fallthru
          _
      $region40: #{tpu_custom_call.1} parent=5 // pred_fallthru
        _
      %p518 = scmp.le.s32.totalorder 1, %s25
      %p519 = scmp.lt.s32.totalorder %s25, 5
      %p520 = pnand %p518, %p519
      %p521 = pneg %p520
      // Predicated region
      $region69: #{tpu_custom_call.1} parent=5 // pred_check
        _
      $region70: #{tpu_custom_call.1} parent=5 // pred_check_branch
        %523 = sbr.rel (%p520) target = $region72
      $region71: #{tpu_custom_call.1} parent=5 // pred_region
        %s524 = ssub.s32 %s25, 1
        %s525 = smul.u32 2, %s34
        %p526 = scmp.lt.s32.totalorder %s525, 1
        %s527 = scalar_select %p526, %s525, 1
        %s528 = smul.addr %s527, 8
        %s529 = scalar_lea.vmem %s0, %s528
        %p530 = pneg %p63
        %p531 = pneg %p60
        %s532 = smul.u32 2, %s34
        %p533 = scmp.lt.s32.totalorder %s532, 1
        %s534 = scalar_select %p533, %s532, 1
        %s535 = smul.addr %s534, 8
        %s536 = scalar_lea.vmem %s1, %s535
        %p537 = pneg %p89
        %p538 = pneg %p86
        %s539 = smul.u32 2, %s34
        %p540 = scmp.lt.s32.totalorder %s539, 1
        %s541 = scalar_select %p540, %s539, 1
        %s542 = smul.addr %s541, 8
        %s543 = scalar_lea.vmem %s2, %s542
        %p544 = pneg %p115
        %p545 = pneg %p112
        %p546 = scmp.lt.s32.totalorder %s35, 3
        %s547 = scalar_select %p546, %s35, 3
        %s548 = smul.addr %s547, 4
        %s549 = smul.addr %s548, 4
        %s550 = scalar_lea.vmem %s3, %s549
        %p551 = pneg %p141
        %p552 = pneg %p138
        %p553 = scmp.lt.s32.totalorder %s35, 3
        %s554 = scalar_select %p553, %s35, 3
        %s555 = scalar_lea.vmem %s4, %s554
        %p556 = pneg %p167
        %p557 = pneg %p164
        %p558 = scmp.lt.s32.totalorder %s35, 3
        %s559 = scalar_select %p558, %s35, 3
        %s560 = smul.addr %s559, 4
        %s561 = smul.addr %s560, 4
        %s562 = scalar_lea.vmem %s5, %s561
        %p563 = pneg %p193
        %p564 = pneg %p190
        %p565 = scmp.lt.s32.totalorder %s35, 3
        %s566 = scalar_select %p565, %s35, 3
        %s567 = scalar_lea.vmem %s6, %s566
        %p568 = pneg %p219
        %p569 = pneg %p216
        %p570 = scmp.lt.s32.totalorder %s35, 3
        %s571 = scalar_select %p570, %s35, 3
        %s572 = smul.addr %s571, 4
        %s573 = smul.addr %s572, 4
        %s574 = scalar_lea.vmem %s7, %s573
        %p575 = pneg %p245
        %p576 = pneg %p242
        %p577 = scmp.lt.s32.totalorder %s35, 3
        %s578 = scalar_select %p577, %s35, 3
        %s579 = scalar_lea.vmem %s8, %s578
        %p580 = pneg %p271
        %p581 = pneg %p268
        %p582 = scmp.lt.s32.totalorder %s35, 3
        %s583 = scalar_select %p582, %s35, 3
        %s584 = smul.addr %s583, 4
        %s585 = scalar_lea.vmem %s9, %s584
        %p586 = pneg %p297
        %p587 = pneg %p294
        %p588 = pneg %p318
        %p589 = pneg %p315
        %p590 = pneg %p339
        %p591 = pneg %p336
        %p592 = pneg %p360
        %p593 = pneg %p357
        %p594 = pneg %p386
        %p595 = pneg %p383
        %p596 = pneg %p414
        %p597 = pneg %p411
        %s598 = sand.u32 %s401, 1
        %s599 = scalar_lea.sflag [#allocation6], %s598
        %s600 = sand.u32 %s401, 1
        %s601 = smul.addr %s600, 16
        %s602 = scalar_lea.vmem [#allocation5], %s601
        %s603 = smul.u32 2, %s34
        %p604 = scmp.lt.s32.totalorder %s603, 1
        %s605 = scalar_select %p604, %s603, 1
        %s606 = smul.addr %s605, 8
        %s607 = scalar_lea.vmem %s0, %s606
        %s608 = smul.u32 2, %s34
        %s609 = smul.u32 2, %s34
        %p610 = scmp.lt.s32.totalorder %s609, 1
        %s611 = scalar_select %p610, %s609, 1
        %s612 = smul.addr %s611, 8
        %s613 = scalar_lea.vmem %s1, %s612
        %s614 = smul.u32 2, %s34
        %s615 = smul.u32 2, %s34
        %p616 = scmp.lt.s32.totalorder %s615, 1
        %s617 = scalar_select %p616, %s615, 1
        %s618 = smul.addr %s617, 8
        %s619 = scalar_lea.vmem %s2, %s618
        %s620 = smul.u32 2, %s34
        %p621 = scmp.lt.s32.totalorder %s35, 3
        %s622 = scalar_select %p621, %s35, 3
        %s623 = smul.addr %s622, 4
        %s624 = smul.addr %s623, 4
        %s625 = scalar_lea.vmem %s3, %s624
        %p626 = scmp.lt.s32.totalorder %s35, 3
        %s627 = scalar_select %p626, %s35, 3
        %s628 = scalar_lea.vmem %s4, %s627
        %p629 = scmp.lt.s32.totalorder %s35, 3
        %s630 = scalar_select %p629, %s35, 3
        %s631 = smul.addr %s630, 4
        %s632 = smul.addr %s631, 4
        %s633 = scalar_lea.vmem %s5, %s632
        %p634 = scmp.lt.s32.totalorder %s35, 3
        %s635 = scalar_select %p634, %s35, 3
        %s636 = scalar_lea.vmem %s6, %s635
        %p637 = scmp.lt.s32.totalorder %s35, 3
        %s638 = scalar_select %p637, %s35, 3
        %s639 = smul.addr %s638, 4
        %s640 = smul.addr %s639, 4
        %s641 = scalar_lea.vmem %s7, %s640
        %p642 = scmp.lt.s32.totalorder %s35, 3
        %s643 = scalar_select %p642, %s35, 3
        %s644 = scalar_lea.vmem %s8, %s643
        %p645 = scmp.lt.s32.totalorder %s35, 3
        %s646 = scalar_select %p645, %s35, 3
        %s647 = smul.addr %s646, 4
        %s648 = scalar_lea.vmem %s9, %s647
        %s649 = smul.u32 2, %s34
        %s650 = smul.u32 2, %s34
        %p652 = scmp.eq.s32.totalorder %s35, 0
        // Predicated region
        $region73: #{tpu_custom_call.1} parent=71 // pred_check
          %p653 = pneg %p652
        $region74: #{tpu_custom_call.1} parent=71 // pred_check_branch
          %655 = sbr.rel (%p653) target = $region76
        $region75: #{tpu_custom_call.1} parent=71 // pred_region
          %vm656 = vcmask 261120
          %657 = vst.msk [vmem:[#allocation2] sm:$0xff] %vm656, 0.0
          %658 = vst.msk [vmem:[#allocation2 + $0x8] sm:$0xff] %vm656, 0.0
        $region76: #{tpu_custom_call.1} parent=71 // pred_fallthru
          _
        %v659 = vld [vmem:[%s607] sm:$0xff]
        %v660 = vld [vmem:[%s607 + $0x8] sm:$0xff]
        %v661 = vld [vmem:[%s613] sm:$0xff]
        %v662 = vld [vmem:[%s613 + $0x8] sm:$0xff]
        %v663 = vld [vmem:[%s619] sm:$0xff]
        %v664 = vld [vmem:[%s619 + $0x8] sm:$0xff]
        %v665 = vpack.c.bf16 %v660, %v659
        %v666 = vld [vmem:[%s625] sm:$0xf]
        %v667 = vld [vmem:[%s625 + $0x4] sm:$0xf]
        %v668 = vld [vmem:[%s625 + $0x8] sm:$0xf]
        %v669 = vld [vmem:[%s625 + $0xc] sm:$0xf]
        %v670 = vld [vmem:[%s628] sm:$0x1]
        %v672 = vlaneseq
        %v673 = vshrl.u32 %v672, 7
        %v674 = vsub.s32 0, %v673
        %v675 = vrot.slane %v670, %v674
        %v681 = vunpack.c.l.b16 %v666
        %v682 = vunpack.c.l.b16 %v667
        %v683 = vunpack.c.l.b16 %v668
        %v684 = vunpack.c.l.b16 %v669
        %v685 = vpack.c.b16 %v682, %v681
        %v686 = vpack.c.b16 %v684, %v683
        %vm689 = vcmask 261120
        %v691 = vsel %vm689, %v665, 0
        %693 = vmatprep.subr.bf16.mxu0 0
        %694 = vmatpush1.bf16.msra.mxu0 0
        %695 = vmatprep.subr.bf16.mxu0 0
        %696 = vmatpush1.bf16.msra.mxu0 0
        %697 = vmatprep.subr.bf16.mxu0 0
        %698 = vmatpush1.bf16.msra.mxu0 0
        %699 = vmatprep.subr.bf16.mxu0 0
        %700 = vmatpush1.bf16.msra.mxu0 0
        %701 = vmatprep.subr.bf16.mxu0 0
        %702 = vmatpush1.bf16.msra.mxu0 0
        %703 = vmatprep.subr.bf16.mxu0 0
        %704 = vmatpush1.bf16.msra.mxu0 0
        %705 = vmatprep.subr.bf16.mxu0 0
        %706 = vmatpush1.bf16.msra.mxu0 %v686
        %707 = vmatprep.subr.bf16.mxu0 0
        %708 = vmatpush1.bf16.msra.mxu0 %v685
        %709 = vmatprep.subr.bf16.mxu0 0
        %710 = vmatpush2.bf16.msra.mxu0 0
        %711 = vmatprep.subr.bf16.mxu0 0
        %712 = vmatpush2.bf16.msra.mxu0 0
        %713 = vmatprep.subr.bf16.mxu0 0
        %714 = vmatpush2.bf16.msra.mxu0 0
        %715 = vmatprep.subr.bf16.mxu0 0
        %716 = vmatpush2.bf16.msra.mxu0 0
        %717 = vmatprep.subr.bf16.mxu0 0
        %718 = vmatpush2.bf16.msra.mxu0 0
        %719 = vmatprep.subr.bf16.mxu0 0
        %720 = vmatpush2.bf16.msra.mxu0 0
        %721 = vmatprep.subr.bf16.mxu0 0
        %722 = vmatpush2.bf16.msra.mxu0 0
        %723 = vmatprep.subr.bf16.mxu0 0
        %724 = vmatpush2.bf16.msra.mxu0 0
        %725 = vmatprep.mubr.bf16.mxu0 0
        %726 = vmatmul.mubr.bf16.gmra.mxu0 %v691
        %v727 = vpop.f32.mrf.mxu0
        %v728 = vadd.f32 %v675, %v727
        %v729 = vpop.f32.mrf.mxu0
        %v730 = vpop.f32.mrf.mxu0
        %v731 = vadd.f32 %v675, %v730
        %v732 = vpop.f32.mrf.mxu0
        %733 = vdwg.mxu0
        %v734 = vpack.c.bf16 %v662, %v661
        %v735 = vld [vmem:[%s633] sm:$0xf]
        %v736 = vld [vmem:[%s633 + $0x4] sm:$0xf]
        %v737 = vld [vmem:[%s633 + $0x8] sm:$0xf]
        %v738 = vld [vmem:[%s633 + $0xc] sm:$0xf]
        %v739 = vld [vmem:[%s636] sm:$0x1]
        %v741 = vlaneseq
        %v742 = vshrl.u32 %v741, 7
        %v743 = vsub.s32 0, %v742
        %v744 = vrot.slane %v739, %v743
        %v750 = vunpack.c.l.b16 %v735
        %v751 = vunpack.c.l.b16 %v736
        %v752 = vunpack.c.l.b16 %v737
        %v753 = vunpack.c.l.b16 %v738
        %v754 = vpack.c.b16 %v751, %v750
        %v755 = vpack.c.b16 %v753, %v752
        %v759 = vsel %vm689, %v734, 0
        %761 = vmatprep.subr.bf16.mxu0 0
        %762 = vmatpush1.bf16.msra.mxu0 0
        %763 = vmatprep.subr.bf16.mxu0 0
        %764 = vmatpush1.bf16.msra.mxu0 0
        %765 = vmatprep.subr.bf16.mxu0 0
        %766 = vmatpush1.bf16.msra.mxu0 0
        %767 = vmatprep.subr.bf16.mxu0 0
        %768 = vmatpush1.bf16.msra.mxu0 0
        %769 = vmatprep.subr.bf16.mxu0 0
        %770 = vmatpush1.bf16.msra.mxu0 0
        %771 = vmatprep.subr.bf16.mxu0 0
        %772 = vmatpush1.bf16.msra.mxu0 0
        %773 = vmatprep.subr.bf16.mxu0 0
        %774 = vmatpush1.bf16.msra.mxu0 %v755
        %775 = vmatprep.subr.bf16.mxu0 0
        %776 = vmatpush1.bf16.msra.mxu0 %v754
        %777 = vmatprep.subr.bf16.mxu0 0
        %778 = vmatpush2.bf16.msra.mxu0 0
        %779 = vmatprep.subr.bf16.mxu0 0
        %780 = vmatpush2.bf16.msra.mxu0 0
        %781 = vmatprep.subr.bf16.mxu0 0
        %782 = vmatpush2.bf16.msra.mxu0 0
        %783 = vmatprep.subr.bf16.mxu0 0
        %784 = vmatpush2.bf16.msra.mxu0 0
        %785 = vmatprep.subr.bf16.mxu0 0
        %786 = vmatpush2.bf16.msra.mxu0 0
        %787 = vmatprep.subr.bf16.mxu0 0
        %788 = vmatpush2.bf16.msra.mxu0 0
        %789 = vmatprep.subr.bf16.mxu0 0
        %790 = vmatpush2.bf16.msra.mxu0 0
        %791 = vmatprep.subr.bf16.mxu0 0
        %792 = vmatpush2.bf16.msra.mxu0 0
        %793 = vmatprep.mubr.bf16.mxu0 0
        %794 = vmatmul.mubr.bf16.gmra.mxu0 %v759
        %v795 = vpop.f32.mrf.mxu0
        %v796 = vadd.f32 %v744, %v795
        %v797 = vpop.f32.mrf.mxu0
        %v798 = vpop.f32.mrf.mxu0
        %v799 = vadd.f32 %v744, %v798
        %v800 = vpop.f32.mrf.mxu0
        %801 = vdwg.mxu0
        %v802 = vpack.c.bf16 %v664, %v663
        %v803 = vld [vmem:[%s641] sm:$0xf]
        %v804 = vld [vmem:[%s641 + $0x4] sm:$0xf]
        %v805 = vld [vmem:[%s641 + $0x8] sm:$0xf]
        %v806 = vld [vmem:[%s641 + $0xc] sm:$0xf]
        %v807 = vld [vmem:[%s644] sm:$0x1]
        %v809 = vlaneseq
        %v810 = vshrl.u32 %v809, 7
        %v811 = vsub.s32 0, %v810
        %v812 = vrot.slane %v807, %v811
        %v818 = vunpack.c.l.b16 %v803
        %v819 = vunpack.c.l.b16 %v804
        %v820 = vunpack.c.l.b16 %v805
        %v821 = vunpack.c.l.b16 %v806
        %v822 = vpack.c.b16 %v819, %v818
        %v823 = vpack.c.b16 %v821, %v820
        %v827 = vsel %vm689, %v802, 0
        %829 = vmatprep.subr.bf16.mxu0 0
        %830 = vmatpush1.bf16.msra.mxu0 0
        %831 = vmatprep.subr.bf16.mxu0 0
        %832 = vmatpush1.bf16.msra.mxu0 0
        %833 = vmatprep.subr.bf16.mxu0 0
        %834 = vmatpush1.bf16.msra.mxu0 0
        %835 = vmatprep.subr.bf16.mxu0 0
        %836 = vmatpush1.bf16.msra.mxu0 0
        %837 = vmatprep.subr.bf16.mxu0 0
        %838 = vmatpush1.bf16.msra.mxu0 0
        %839 = vmatprep.subr.bf16.mxu0 0
        %840 = vmatpush1.bf16.msra.mxu0 0
        %841 = vmatprep.subr.bf16.mxu0 0
        %842 = vmatpush1.bf16.msra.mxu0 %v823
        %843 = vmatprep.subr.bf16.mxu0 0
        %844 = vmatpush1.bf16.msra.mxu0 %v822
        %845 = vmatprep.subr.bf16.mxu0 0
        %846 = vmatpush2.bf16.msra.mxu0 0
        %847 = vmatprep.subr.bf16.mxu0 0
        %848 = vmatpush2.bf16.msra.mxu0 0
        %849 = vmatprep.subr.bf16.mxu0 0
        %850 = vmatpush2.bf16.msra.mxu0 0
        %851 = vmatprep.subr.bf16.mxu0 0
        %852 = vmatpush2.bf16.msra.mxu0 0
        %853 = vmatprep.subr.bf16.mxu0 0
        %854 = vmatpush2.bf16.msra.mxu0 0
        %855 = vmatprep.subr.bf16.mxu0 0
        %856 = vmatpush2.bf16.msra.mxu0 0
        %857 = vmatprep.subr.bf16.mxu0 0
        %858 = vmatpush2.bf16.msra.mxu0 0
        %859 = vmatprep.subr.bf16.mxu0 0
        %860 = vmatpush2.bf16.msra.mxu0 0
        %861 = vmatprep.mubr.bf16.mxu0 0
        %862 = vmatmul.mubr.bf16.gmra.mxu0 %v827
        %v863 = vpop.f32.mrf.mxu0
        %v864 = vadd.f32 %v812, %v863
        %v865 = vpop.f32.mrf.mxu0
        %v866 = vpop.f32.mrf.mxu0
        %v867 = vadd.f32 %v812, %v866
        %v868 = vpop.f32.mrf.mxu0
        %869 = vdwg.mxu0
        %v870 = vpack.c.bf16 %v728, %v728
        %v871 = vpack.c.bf16 %v731, %v731
        %v872 = vpack.c.bf16 %v796, %v796
        %v873 = vpack.c.bf16 %v799, %v799
        %vm874 = vcmask 64512
        %v876 = vsel %vm874, %v870, 0
        %v879 = vsel %vm874, %v872, 0
        %881 = vmatprep.subr.bf16.mxu0 0
        %882 = vmatpush1.bf16.xpose.msra.mxu0 0
        %883 = vmatprep.subr.bf16.mxu0 0
        %884 = vmatpush1.bf16.xpose.msra.mxu0 0
        %885 = vmatprep.subr.bf16.mxu0 0
        %886 = vmatpush1.bf16.xpose.msra.mxu0 0
        %887 = vmatprep.subr.bf16.mxu0 0
        %888 = vmatpush1.bf16.xpose.msra.mxu0 0
        %889 = vmatprep.subr.bf16.mxu0 0
        %890 = vmatpush1.bf16.xpose.msra.mxu0 0
        %891 = vmatprep.subr.bf16.mxu0 0
        %892 = vmatpush1.bf16.xpose.msra.mxu0 0
        %893 = vmatprep.subr.bf16.mxu0 0
        %894 = vmatpush1.bf16.xpose.msra.mxu0 0
        %895 = vmatprep.subr.bf16.mxu0 0
        %896 = vmatpush1.bf16.xpose.msra.mxu0 %v879
        %897 = vmatprep.subr.bf16.mxu0 0
        %898 = vmatpush2.bf16.xpose.msra.mxu0 0
        %899 = vmatprep.subr.bf16.mxu0 0
        %900 = vmatpush2.bf16.xpose.msra.mxu0 0
        %901 = vmatprep.subr.bf16.mxu0 0
        %902 = vmatpush2.bf16.xpose.msra.mxu0 0
        %903 = vmatprep.subr.bf16.mxu0 0
        %904 = vmatpush2.bf16.xpose.msra.mxu0 0
        %905 = vmatprep.subr.bf16.mxu0 0
        %906 = vmatpush2.bf16.xpose.msra.mxu0 0
        %907 = vmatprep.subr.bf16.mxu0 0
        %908 = vmatpush2.bf16.xpose.msra.mxu0 0
        %909 = vmatprep.subr.bf16.mxu0 0
        %910 = vmatpush2.bf16.xpose.msra.mxu0 0
        %911 = vmatprep.subr.bf16.mxu0 0
        %912 = vmatpush2.bf16.xpose.msra.mxu0 0
        %913 = vmatprep.mubr.bf16.mxu0 0
        %914 = vmatmul.mubr.bf16.gmra.mxu0 %v876
        %v915 = vpop.f32.mrf.mxu0
        %v916 = vadd.f32 0.0, %v915
        %v917 = vpop.f32.mrf.mxu0
        %v918 = vpop.f32.mrf.mxu0
        %v919 = vpop.f32.mrf.mxu0
        %920 = vdwg.mxu0
        %v922 = vsel %vm874, %v871, 0
        %v925 = vsel %vm874, %v873, 0
        %927 = vmatprep.subr.bf16.mxu0 0
        %928 = vmatpush1.bf16.xpose.msra.mxu0 0
        %929 = vmatprep.subr.bf16.mxu0 0
        %930 = vmatpush1.bf16.xpose.msra.mxu0 0
        %931 = vmatprep.subr.bf16.mxu0 0
        %932 = vmatpush1.bf16.xpose.msra.mxu0 0
        %933 = vmatprep.subr.bf16.mxu0 0
        %934 = vmatpush1.bf16.xpose.msra.mxu0 0
        %935 = vmatprep.subr.bf16.mxu0 0
        %936 = vmatpush1.bf16.xpose.msra.mxu0 0
        %937 = vmatprep.subr.bf16.mxu0 0
        %938 = vmatpush1.bf16.xpose.msra.mxu0 0
        %939 = vmatprep.subr.bf16.mxu0 0
        %940 = vmatpush1.bf16.xpose.msra.mxu0 0
        %941 = vmatprep.subr.bf16.mxu0 0
        %942 = vmatpush1.bf16.xpose.msra.mxu0 %v925
        %943 = vmatprep.subr.bf16.mxu0 0
        %944 = vmatpush2.bf16.xpose.msra.mxu0 0
        %945 = vmatprep.subr.bf16.mxu0 0
        %946 = vmatpush2.bf16.xpose.msra.mxu0 0
        %947 = vmatprep.subr.bf16.mxu0 0
        %948 = vmatpush2.bf16.xpose.msra.mxu0 0
        %949 = vmatprep.subr.bf16.mxu0 0
        %950 = vmatpush2.bf16.xpose.msra.mxu0 0
        %951 = vmatprep.subr.bf16.mxu0 0
        %952 = vmatpush2.bf16.xpose.msra.mxu0 0
        %953 = vmatprep.subr.bf16.mxu0 0
        %954 = vmatpush2.bf16.xpose.msra.mxu0 0
        %955 = vmatprep.subr.bf16.mxu0 0
        %956 = vmatpush2.bf16.xpose.msra.mxu0 0
        %957 = vmatprep.subr.bf16.mxu0 0
        %958 = vmatpush2.bf16.xpose.msra.mxu0 0
        %959 = vmatprep.mubr.bf16.mxu0 0
        %960 = vmatmul.mubr.bf16.gmra.mxu0 %v922
        %v961 = vpop.f32.mrf.mxu0
        %v962 = vadd.f32 0.0, %v961
        %v963 = vpop.f32.mrf.mxu0
        %v964 = vpop.f32.mrf.mxu0
        %v965 = vpop.f32.mrf.mxu0
        %966 = vdwg.mxu0
        %v967 = vsel %vm874, %v916, -inf
        %968 = vmax.xlane.f32.xlu0 %v967
        %v969 = vpop.xlane.xlu0 %968
        %v970 = vsel %vm874, %v962, -inf
        %971 = vmax.xlane.f32.xlu0 %v970
        %v972 = vpop.xlane.xlu0 %971
        %v973 = vsub.f32 %v916, %v969
        %v974 = vsub.f32 %v962, %v972
        %v975 = vmul.f32 %v973, 1.442695
        %v976 = vpow.pop %v975
        %v977 = vmul.f32 %v974, 1.442695
        %v978 = vpow.pop %v977
        %v979 = vsel %vm874, %v976, 0.0
        %980 = vadd.xlane.f32.xlu0 %v979
        %v981 = vpop.xlane.xlu0 %980
        %v982 = vsel %vm874, %v978, 0.0
        %983 = vadd.xlane.f32.xlu0 %v982
        %v984 = vpop.xlane.xlu0 %983
        %v985 = vrcp.pop %v981
        %v986 = vrcp.pop %v984
        %v987 = vmul.f32 %v976, %v985
        %v988 = vmul.f32 %v978, %v986
        %989 = vst.msk [vmem:[%s602] sm:$0xff] %vm874, %v987
        %990 = vst.msk [vmem:[%s602 + $0x8] sm:$0xff] %vm874, %v988
        %v991 = vpack.c.bf16 %v987, %v987
        %v992 = vpack.c.bf16 %v988, %v988
        %v993 = vpack.c.bf16 %v864, %v864
        %v994 = vpack.c.bf16 %v867, %v867
        %v996 = vsel %vm874, %v991, 0
        %vm998 = vcmask 1043456
        %v1000 = vsel %vm998, %v993, 0
        %1002 = vmatprep.subr.bf16.mxu0 0
        %1003 = vmatpush1.bf16.msra.mxu0 0
        %1004 = vmatprep.subr.bf16.mxu0 0
        %1005 = vmatpush1.bf16.msra.mxu0 0
        %1006 = vmatprep.subr.bf16.mxu0 0
        %1007 = vmatpush1.bf16.msra.mxu0 0
        %1008 = vmatprep.subr.bf16.mxu0 0
        %1009 = vmatpush1.bf16.msra.mxu0 0
        %1010 = vmatprep.subr.bf16.mxu0 0
        %1011 = vmatpush1.bf16.msra.mxu0 0
        %1012 = vmatprep.subr.bf16.mxu0 0
        %1013 = vmatpush1.bf16.msra.mxu0 0
        %1014 = vmatprep.subr.bf16.mxu0 0
        %1015 = vmatpush1.bf16.msra.mxu0 0
        %1016 = vmatprep.subr.bf16.mxu0 0
        %1017 = vmatpush1.bf16.msra.mxu0 %v1000
        %1018 = vmatprep.subr.bf16.mxu0 0
        %1019 = vmatpush2.bf16.msra.mxu0 0
        %1020 = vmatprep.subr.bf16.mxu0 0
        %1021 = vmatpush2.bf16.msra.mxu0 0
        %1022 = vmatprep.subr.bf16.mxu0 0
        %1023 = vmatpush2.bf16.msra.mxu0 0
        %1024 = vmatprep.subr.bf16.mxu0 0
        %1025 = vmatpush2.bf16.msra.mxu0 0
        %1026 = vmatprep.subr.bf16.mxu0 0
        %1027 = vmatpush2.bf16.msra.mxu0 0
        %1028 = vmatprep.subr.bf16.mxu0 0
        %1029 = vmatpush2.bf16.msra.mxu0 0
        %1030 = vmatprep.subr.bf16.mxu0 0
        %1031 = vmatpush2.bf16.msra.mxu0 0
        %1032 = vmatprep.subr.bf16.mxu0 0
        %1033 = vmatpush2.bf16.msra.mxu0 0
        %1034 = vmatprep.mubr.bf16.mxu0 0
        %1035 = vmatmul.mubr.bf16.gmra.mxu0 %v996
        %v1036 = vpop.f32.mrf.mxu0
        %v1037 = vadd.f32 0.0, %v1036
        %v1038 = vpop.f32.mrf.mxu0
        %v1039 = vpop.f32.mrf.mxu0
        %v1040 = vpop.f32.mrf.mxu0
        %1041 = vdwg.mxu0
        %v1043 = vsel %vm874, %v992, 0
        %v1046 = vsel %vm998, %v994, 0
        %1048 = vmatprep.subr.bf16.mxu0 0
        %1049 = vmatpush1.bf16.msra.mxu0 0
        %1050 = vmatprep.subr.bf16.mxu0 0
        %1051 = vmatpush1.bf16.msra.mxu0 0
        %1052 = vmatprep.subr.bf16.mxu0 0
        %1053 = vmatpush1.bf16.msra.mxu0 0
        %1054 = vmatprep.subr.bf16.mxu0 0
        %1055 = vmatpush1.bf16.msra.mxu0 0
        %1056 = vmatprep.subr.bf16.mxu0 0
        %1057 = vmatpush1.bf16.msra.mxu0 0
        %1058 = vmatprep.subr.bf16.mxu0 0
        %1059 = vmatpush1.bf16.msra.mxu0 0
        %1060 = vmatprep.subr.bf16.mxu0 0
        %1061 = vmatpush1.bf16.msra.mxu0 0
        %1062 = vmatprep.subr.bf16.mxu0 0
        %1063 = vmatpush1.bf16.msra.mxu0 %v1046
        %1064 = vmatprep.subr.bf16.mxu0 0
        %1065 = vmatpush2.bf16.msra.mxu0 0
        %1066 = vmatprep.subr.bf16.mxu0 0
        %1067 = vmatpush2.bf16.msra.mxu0 0
        %1068 = vmatprep.subr.bf16.mxu0 0
        %1069 = vmatpush2.bf16.msra.mxu0 0
        %1070 = vmatprep.subr.bf16.mxu0 0
        %1071 = vmatpush2.bf16.msra.mxu0 0
        %1072 = vmatprep.subr.bf16.mxu0 0
        %1073 = vmatpush2.bf16.msra.mxu0 0
        %1074 = vmatprep.subr.bf16.mxu0 0
        %1075 = vmatpush2.bf16.msra.mxu0 0
        %1076 = vmatprep.subr.bf16.mxu0 0
        %1077 = vmatpush2.bf16.msra.mxu0 0
        %1078 = vmatprep.subr.bf16.mxu0 0
        %1079 = vmatpush2.bf16.msra.mxu0 0
        %1080 = vmatprep.mubr.bf16.mxu0 0
        %1081 = vmatmul.mubr.bf16.gmra.mxu0 %v1043
        %v1082 = vpop.f32.mrf.mxu0
        %v1083 = vadd.f32 0.0, %v1082
        %v1084 = vpop.f32.mrf.mxu0
        %v1085 = vpop.f32.mrf.mxu0
        %v1086 = vpop.f32.mrf.mxu0
        %1087 = vdwg.mxu0
        %v1088 = vld [vmem:[#allocation2] sm:$0xff]
        %v1089 = vld [vmem:[#allocation2 + $0x8] sm:$0xff]
        %v1090 = vpack.c.bf16 %v1083, %v1037
        %v1091 = vld [vmem:[%s648] sm:$0xf]
        %v1093 = vsel %vm874, %v1090, 0
        %v1096 = vsel %vm998, %v1091, 0
        %1098 = vmatprep.subr.bf16.mxu0 0
        %1099 = vmatpush1.bf16.msra.mxu0 0
        %1100 = vmatprep.subr.bf16.mxu0 0
        %1101 = vmatpush1.bf16.msra.mxu0 0
        %1102 = vmatprep.subr.bf16.mxu0 0
        %1103 = vmatpush1.bf16.msra.mxu0 0
        %1104 = vmatprep.subr.bf16.mxu0 0
        %1105 = vmatpush1.bf16.msra.mxu0 0
        %1106 = vmatprep.subr.bf16.mxu0 0
        %1107 = vmatpush1.bf16.msra.mxu0 0
        %1108 = vmatprep.subr.bf16.mxu0 0
        %1109 = vmatpush1.bf16.msra.mxu0 0
        %1110 = vmatprep.subr.bf16.mxu0 0
        %1111 = vmatpush1.bf16.msra.mxu0 0
        %1112 = vmatprep.subr.bf16.mxu0 0
        %1113 = vmatpush1.bf16.msra.mxu0 %v1096
        %1114 = vmatprep.subr.bf16.mxu0 0
        %1115 = vmatpush2.bf16.msra.mxu0 0
        %1116 = vmatprep.subr.bf16.mxu0 0
        %1117 = vmatpush2.bf16.msra.mxu0 0
        %1118 = vmatprep.subr.bf16.mxu0 0
        %1119 = vmatpush2.bf16.msra.mxu0 0
        %1120 = vmatprep.subr.bf16.mxu0 0
        %1121 = vmatpush2.bf16.msra.mxu0 0
        %1122 = vmatprep.subr.bf16.mxu0 0
        %1123 = vmatpush2.bf16.msra.mxu0 0
        %1124 = vmatprep.subr.bf16.mxu0 0
        %1125 = vmatpush2.bf16.msra.mxu0 0
        %1126 = vmatprep.subr.bf16.mxu0 0
        %1127 = vmatpush2.bf16.msra.mxu0 0
        %1128 = vmatprep.subr.bf16.mxu0 0
        %1129 = vmatpush2.bf16.msra.mxu0 0
        %1130 = vmatprep.mubr.bf16.mxu0 0
        %1131 = vmatmul.mubr.bf16.gmra.mxu0 %v1093
        %v1132 = vpop.f32.mrf.mxu0
        %v1133 = vadd.f32 0.0, %v1132
        %v1134 = vpop.f32.mrf.mxu0
        %v1135 = vpop.f32.mrf.mxu0
        %v1136 = vadd.f32 0.0, %v1135
        %v1137 = vpop.f32.mrf.mxu0
        %1138 = vdwg.mxu0
        %v1139 = vadd.f32 %v1088, %v1133
        %v1140 = vadd.f32 %v1089, %v1136
        %1141 = vst.msk [vmem:[#allocation2] sm:$0xff] %vm689, %v1139
        %1142 = vst.msk [vmem:[#allocation2 + $0x8] sm:$0xff] %vm689, %v1140
        %p1143 = scmp.eq.s32.totalorder %s35, 3
        // Predicated region
        $region77: #{tpu_custom_call.1} parent=71 // pred_check
          %p1144 = pneg %p1143
        $region78: #{tpu_custom_call.1} parent=71 // pred_check_branch
          %1146 = sbr.rel (%p1144) target = $region80
        $region79: #{tpu_custom_call.1} parent=71 // pred_region
          %v1147 = vld [vmem:[#allocation2] sm:$0xff]
          %v1148 = vld [vmem:[#allocation2 + $0x8] sm:$0xff]
          %v1149 = vld [vmem:[%s10] sm:$0x1]
          %v1151 = vlaneseq
          %v1152 = vshrl.u32 %v1151, 7
          %v1153 = vsub.s32 0, %v1152
          %v1154 = vrot.slane %v1149, %v1153
          %v1156 = vadd.f32 %v1147, %v1154
          %v1157 = vadd.f32 %v1148, %v1154
          %v1158 = vadd.f32 %v1156, %v659
          %v1159 = vadd.f32 %v1157, %v660
          %v1160 = vsel %vm689, %v1158, 0.0
          %1161 = vadd.xlane.f32.xlu0 %v1160
          %v1162 = vpop.xlane.xlu0 %1161
          %v1163 = vsel %vm689, %v1159, 0.0
          %1164 = vadd.xlane.f32.xlu0 %v1163
          %v1165 = vpop.xlane.xlu0 %1164
          %v1166 = vrcp.pop 32.0
          %v1167 = vmul.f32 %v1162, %v1166
          %v1168 = vmul.f32 %v1165, %v1166
          %v1169 = vsub.f32 %v1158, %v1167
          %v1170 = vsub.f32 %v1159, %v1168
          %v1171 = vmul.f32 %v1169, %v1169
          %v1172 = vmul.f32 %v1170, %v1170
          %v1173 = vsel %vm689, %v1171, 0.0
          %1174 = vadd.xlane.f32.xlu0 %v1173
          %v1175 = vpop.xlane.xlu0 %1174
          %v1176 = vsel %vm689, %v1172, 0.0
          %1177 = vadd.xlane.f32.xlu0 %v1176
          %v1178 = vpop.xlane.xlu0 %1177
          %v1179 = vmul.f32 %v1175, %v1166
          %v1180 = vmul.f32 %v1178, %v1166
          %v1181 = vadd.f32 %v1179, 1e-05
          %v1182 = vadd.f32 %v1180, 1e-05
          %v1183 = vrsqrt.pop %v1181
          %v1184 = vrsqrt.pop %v1182
          %v1185 = vmul.f32 %v1169, %v1183
          %v1186 = vmul.f32 %v1170, %v1184
          %v1187 = vld [vmem:[%s11] sm:$0x1]
          %v1189 = vlaneseq
          %v1190 = vshrl.u32 %v1189, 7
          %v1191 = vsub.s32 0, %v1190
          %v1192 = vrot.slane %v1187, %v1191
          %v1194 = vmul.f32 %v1185, %v1192
          %v1195 = vmul.f32 %v1186, %v1192
          %v1196 = vld [vmem:[%s12] sm:$0x1]
          %v1198 = vlaneseq
          %v1199 = vshrl.u32 %v1198, 7
          %v1200 = vsub.s32 0, %v1199
          %v1201 = vrot.slane %v1196, %v1200
          %v1203 = vadd.f32 %v1194, %v1201
          %v1204 = vadd.f32 %v1195, %v1201
          %1205 = vst.msk [vmem:[#allocation3] sm:$0xff] %vm689, %v1203
          %1206 = vst.msk [vmem:[#allocation3 + $0x8] sm:$0xff] %vm689, %v1204
        $region80: #{tpu_custom_call.1} parent=71 // pred_fallthru
          _
        %s1207 = sand.u32 %s401, 1
        %s1208 = scalar_lea.sflag [#allocation6], %s1207
        %s1209 = sand.u32 %s401, 1
        %s1210 = smul.addr %s1209, 16
        %s1211 = scalar_lea.vmem [#allocation5], %s1210
        // Predicated region
        $region81: #{tpu_custom_call.1} parent=71 // pred_check
          %p1212 = pneg %p383
        $region82: #{tpu_custom_call.1} parent=71 // pred_check_branch
          %1214 = sbr.rel (%p1212) target = $region84
        $region83: #{tpu_custom_call.1} parent=71 // pred_region
          %s1215 = smul.u32 2, %s34
          %s1217 = ssub.s32 256, 256
          %1218 = vsyncadd [#allocation4], %s1217
          %s1219 = smul.addr %s1215, 128
          %s1220 = scalar_lea.hbm %s13, %s1219
          %s1221 = sshll.u32 [#allocation3], 4
          %s1222 = int_to_ptr.vmem [resolvable:$true] %s1221
          %1227 = dma.vmem_to_hbm [thread:$0]  %s1222, 256, %s1220, [#allocation4], 128, 128, 8
        $region84: #{tpu_custom_call.1} parent=71 // pred_fallthru
          _
        // Predicated region
        $region85: #{tpu_custom_call.1} parent=71 // pred_check
          %p1228 = pneg %p411
        $region86: #{tpu_custom_call.1} parent=71 // pred_check_branch
          %1230 = sbr.rel (%p1228) target = $region88
        $region87: #{tpu_custom_call.1} parent=71 // pred_region
          %s1231 = smul.u32 2, %s34
          %s1233 = ssub.s32 256, 256
          %1234 = vsyncadd %s1208, %s1233
          %s1235 = smul.addr %s1231, 4
          %s1236 = sadd.s32 %s35, %s1235
          %s1237 = smul.addr %s1236, 128
          %s1238 = scalar_lea.hbm %s14, %s1237
          %s1239 = sshll.u32 %s1211, 4
          %s1240 = int_to_ptr.vmem [resolvable:$true] %s1239
          %1245 = dma.vmem_to_hbm [thread:$0]  %s1240, 256, %s1238, %s1208, 128, 512, 8
        $region88: #{tpu_custom_call.1} parent=71 // pred_fallthru
          _
        // Predicated region
        $region89: #{tpu_custom_call.1} parent=71 // pred_check
          %p1246 = pneg %p383
        $region90: #{tpu_custom_call.1} parent=71 // pred_check_branch
          %1248 = sbr.rel (%p1246) target = $region92
        $region91: #{tpu_custom_call.1} parent=71 // pred_region
          %1249 = dma.done [#allocation4], 256
        $region92: #{tpu_custom_call.1} parent=71 // pred_fallthru
          _
      $region72: #{tpu_custom_call.1} parent=5 // pred_fallthru
        _
      %p1250 = scmp.le.s32.totalorder 2, %s25
      // Predicated region
      $region93: #{tpu_custom_call.1} parent=5 // pred_check
        %p1251 = pneg %p1250
      $region94: #{tpu_custom_call.1} parent=5 // pred_check_branch
        %1253 = sbr.rel (%p1251) target = $region96
      $region95: #{tpu_custom_call.1} parent=5 // pred_region
        %s1254 = ssub.s32 %s25, 2
        // Predicated region
        $region97: #{tpu_custom_call.1} parent=95 // pred_check
          %p1255 = pneg %p417
        $region98: #{tpu_custom_call.1} parent=95 // pred_check_branch
          %1257 = sbr.rel (%p1255) target = $region100
        $region99: #{tpu_custom_call.1} parent=95 // pred_region
          %s1258 = sand.u32 %s402, 1
          %s1259 = scalar_lea.sflag [#allocation6], %s1258
          %s1260 = sand.u32 %s402, 1
          %s1261 = smul.addr %s1260, 16
          %s1262 = scalar_lea.vmem [#allocation5], %s1261
          %1263 = dma.done %s1259, 256
        $region100: #{tpu_custom_call.1} parent=95 // pred_fallthru
          _
      $region96: #{tpu_custom_call.1} parent=5 // pred_fallthru
        _
    $region6: #{tpu_custom_call.1} parent=1 // loop_footer
      %s29 = sadd.s32 1, %s25
    $region7: #{tpu_custom_call.1} parent=1 // loop_footer_branch
      %24 = sbr.rel target = $region3
    $region8: #{tpu_custom_call.1} parent=1 // loop_exit
      _
    %1264 = vsyncpa [#allocation4], 1
    %s1265 = scalar_lea.sflag [#allocation4], 1
    %1266 = vsyncpa %s1265, 1
    %1267 = vsyncpa [#allocation6], 1
    %s1268 = scalar_lea.sflag [#allocation6], 1
    %1269 = vsyncpa %s1268, 1

</llo_original>
